<compile_context>
chip_gen: v7x
topology: tpu7x:2x2x1
jax: 0.10.0
libtpu: 0.0.40
codegen_flags: <defaults>
</compile_context>

<pallas_src>
import functools

import jax
import jax.numpy as jnp
from jax import lax
from jax.experimental import pallas as pl
from jax.experimental.pallas import tpu as pltpu


# ----------------------------- fused kernel --------------------------------
def _fused_attention_kernel(x_ref, w_qkv_ref, w_out_ref, b_ref, o_ref, *,
                            batch, seq, heads, dim_head):
    """Whole forward in one invocation.

    x_ref     : (B*N, dim)        flattened activations
    w_qkv_ref : (dim, 3*H*Dh)     packed qkv weight (q-columns pre-scaled)
    w_out_ref : (H*Dh, dim)       output projection weight
    b_ref     : (1, dim)          output projection bias
    o_ref     : (B*N, dim)        output
    """
    inner = heads * dim_head
    x = x_ref[...]                                                   # (B*N, dim)

    # Packed QKV projection: one lane-dense (B*N, 3*H*Dh) MXU result.
    qkv = jnp.dot(x, w_qkv_ref[...], preferred_element_type=jnp.float32)

    # Attention is inherently per (batch, head); B*H is small and static, so
    # unroll in Python using only 2-D slices and 2-D dots.
    batch_outs = []
    for b in range(batch):
        r0, r1 = b * seq, (b + 1) * seq
        head_outs = []
        for h in range(heads):
            c0, c1 = h * dim_head, (h + 1) * dim_head
            q_bh = qkv[r0:r1, c0:c1]                                 # (N, Dh)
            k_bh = qkv[r0:r1, inner + c0:inner + c1]                 # (N, Dh)
            v_bh = qkv[r0:r1, 2 * inner + c0:2 * inner + c1]         # (N, Dh)

            # QK^T contracting the last dims directly (no explicit transpose).
            s = lax.dot_general(q_bh, k_bh, (((1,), (1,)), ((), ())),
                                preferred_element_type=jnp.float32)  # (N, N)

            # Numerically-stable softmax; exact EUP reciprocal (free slot).
            s = s - jnp.max(s, axis=-1, keepdims=True)
            p = jnp.exp(s)
            attn = p * pl.reciprocal(jnp.sum(p, axis=-1, keepdims=True))

            head_outs.append(jnp.dot(attn, v_bh,
                                     preferred_element_type=jnp.float32))
        batch_outs.append(jnp.concatenate(head_outs, axis=-1))       # (N, H*Dh)
    o = jnp.concatenate(batch_outs, axis=0)                          # (B*N, H*Dh)

    # Output projection with the head reduction fused into the contraction:
    #   concat_h(o_h) @ W_out  ==  sum_h o_h @ W_out[h]   -> single store.
    out = jnp.dot(o, w_out_ref[...], preferred_element_type=jnp.float32)
    o_ref[...] = (out + b_ref[...]).astype(o_ref.dtype)


# ------------------------------ full forward --------------------------------
def attention_forward(x, w_qkv, w_out, b_out, *, heads, dim_head, mask=None):
    """Reproduces Attention.forward(x, mask=None).

    x:      (B, N, dim)
    w_qkv:  (dim, 3 * heads * dim_head)  -- to_qkv weight (bias=False), columns
                                            laid out [q | k | v], each '(h d)'.
    w_out:  (heads * dim_head, dim)      -- to_out[0] Linear weight
    b_out:  (dim,)                       -- to_out[0] Linear bias
    """
    assert mask is None, "mask path not implemented"  # TODO(synk): mask support
    B, N, dim = x.shape
    inner = heads * dim_head
    assert w_qkv.shape == (dim, 3 * inner)
    assert w_out.shape == (inner, dim)
    scale = float(dim) ** (-0.5)  # module uses dim**-0.5 (verified vs spec)

    # One-time wrapper-side prep (folds into parameter init in a real model):
    #   * fold softmax scale into the q-columns of the packed qkv weight,
    #   * flatten x so the kernel runs as a single grid step.
    w_qkv_s = jnp.concatenate([w_qkv[:, :inner] * scale, w_qkv[:, inner:]],
                              axis=-1)
    x_flat = x.reshape(B * N, dim)
    b2 = b_out.reshape(1, dim)

    flops = (2 * B * N * dim * 3 * inner          # packed qkv projection
             + 4 * B * heads * N * N * dim_head   # qk^T + pv
             + 2 * B * N * inner * dim)           # output projection
    transcendentals = B * heads * N * (N + 1)     # exp + reciprocal
    bytes_accessed = 4 * (x_flat.size + w_qkv_s.size + w_out.size
                          + b2.size + B * N * dim)

    kernel = functools.partial(_fused_attention_kernel,
                               batch=B, seq=N, heads=heads, dim_head=dim_head)

    out_flat = pl.pallas_call(
        kernel,
        out_shape=jax.ShapeDtypeStruct((B * N, dim), x.dtype),
        grid=(1,),  # single step: whole problem fits VMEM comfortably
        in_specs=[
            pl.BlockSpec((B * N, dim), lambda i: (0, 0)),        # x (flattened)
            pl.BlockSpec((dim, 3 * inner), lambda i: (0, 0)),    # packed qkv W
            pl.BlockSpec((inner, dim), lambda i: (0, 0)),        # out proj W
            pl.BlockSpec((1, dim), lambda i: (0, 0)),            # bias
        ],
        out_specs=pl.BlockSpec((B * N, dim), lambda i: (0, 0)),
        compiler_params=pltpu.CompilerParams(
            dimension_semantics=("arbitrary",),
        ),
        cost_estimate=pl.CostEstimate(
            flops=flops,
            transcendentals=transcendentals,
            bytes_accessed=bytes_accessed,
        ),
    )(x_flat, w_qkv_s, w_out, b2)

    return out_flat.reshape(B, N, dim)


# ----------------------------------- main ------------------------------------
if __name__ == "__main__":
    # Small shapes consistent with the module: dim=32, heads=4, dim_head=16.
    B, N, DIM = 2, 8, 32
    HEADS, DIM_HEAD = 4, 16
    INNER = HEADS * DIM_HEAD

    key = jax.random.PRNGKey(0)
    kx, kq, ko, kb = jax.random.split(key, 4)

    x = jax.random.normal(kx, (B, N, DIM), dtype=jnp.float32)
    w_qkv = jax.random.normal(kq, (DIM, 3 * INNER), dtype=jnp.float32) * (DIM ** -0.5)
    w_out = jax.random.normal(ko, (INNER, DIM), dtype=jnp.float32) * (INNER ** -0.5)
    b_out = jax.random.normal(kb, (DIM,), dtype=jnp.float32) * 0.01

    out = attention_forward(x, w_qkv, w_out, b_out, heads=HEADS, dim_head=DIM_HEAD)
    out = jax.block_until_ready(out)

    # Pure-JAX reference (mirrors the PyTorch module, mask=None).
    def ref_forward(x):
        scale = DIM ** -0.5
        qkv = (x.reshape(B * N, DIM) @ w_qkv).reshape(B, N, 3, HEADS, DIM_HEAD)
        q, k, v = (jnp.transpose(qkv[:, :, i], (0, 2, 1, 3)) for i in range(3))
        dots = jnp.einsum("bhid,bhjd->bhij", q, k) * scale
        attn = jax.nn.softmax(dots, axis=-1)
        o = jnp.einsum("bhij,bhjd->bhid", attn, v)
        o = jnp.transpose(o, (0, 2, 1, 3)).reshape(B * N, INNER)
        return (o @ w_out).reshape(B, N, DIM) + b_out

    ref = ref_forward(x)
    assert jnp.allclose(out, ref, atol=1e-3, rtol=1e-3), "mismatch vs reference"

    print("KERNEL_OK")
</pallas_src>

<mosaic_0001>
module attributes {stable_mosaic.version = 11 : i64} {
  func.func @_fused_attention_kernel(%arg0: i32, %arg1: memref<16x32xf32, #tpu.memory_space<vmem>>, %arg2: memref<32x192xf32, #tpu.memory_space<vmem>>, %arg3: memref<64x32xf32, #tpu.memory_space<vmem>>, %arg4: memref<1x32xf32, #tpu.memory_space<vmem>>, %arg5: memref<16x32xf32, #tpu.memory_space<vmem>>) attributes {dimension_semantics = [#tpu.dimension_semantics<arbitrary>], iteration_bounds = array<i64: 1>, scalar_prefetch = 0 : i64, scratch_operands = 0 : i64, tpu.core_type = #tpu.core_type<tc>, window_params = [{pipeline_mode = #tpu.pipeline_mode<synchronous>, transform_indices = @transform_0, window_bounds = array<i64: 16, 32>}, {pipeline_mode = #tpu.pipeline_mode<synchronous>, transform_indices = @transform_1, window_bounds = array<i64: 32, 192>}, {pipeline_mode = #tpu.pipeline_mode<synchronous>, transform_indices = @transform_2, window_bounds = array<i64: 64, 32>}, {pipeline_mode = #tpu.pipeline_mode<synchronous>, transform_indices = @transform_3, window_bounds = array<i64: 1, 32>}, {pipeline_mode = #tpu.pipeline_mode<synchronous>, transform_indices = @transform_4, window_bounds = array<i64: 16, 32>}]} {
    %c0 = arith.constant 0 : index
    %c0_0 = arith.constant 0 : index
    %0 = vector.load %arg1[%c0, %c0_0] : memref<16x32xf32, #tpu.memory_space<vmem>>, vector<16x32xf32>
    %c0_1 = arith.constant 0 : index
    %c0_2 = arith.constant 0 : index
    %1 = vector.load %arg2[%c0_1, %c0_2] : memref<32x192xf32, #tpu.memory_space<vmem>>, vector<32x192xf32>
    %cst = arith.constant dense<0.000000e+00> : vector<16x192xf32>
    %2 = tpu.matmul %0, %1, %cst {dimension_numbers = #tpu.dot_dimension_numbers<[1], [0], [0], [1], [0, 0, 1, 1], [], []>} : vector<16x32xf32>, vector<32x192xf32>, vector<16x192xf32> -> vector<16x192xf32>
    %3 = vector.extract_strided_slice %2 {offsets = [0, 0], sizes = [8, 16], strides = [1, 1]} : vector<16x192xf32> to vector<8x16xf32>
    %4 = vector.extract_strided_slice %2 {offsets = [0, 64], sizes = [8, 16], strides = [1, 1]} : vector<16x192xf32> to vector<8x16xf32>
    %5 = vector.extract_strided_slice %2 {offsets = [0, 128], sizes = [8, 16], strides = [1, 1]} : vector<16x192xf32> to vector<8x16xf32>
    %cst_3 = arith.constant dense<0.000000e+00> : vector<8x8xf32>
    %6 = tpu.matmul %3, %4, %cst_3 {dimension_numbers = #tpu.dot_dimension_numbers<[1], [1], [0], [0], [0, 0, 1, 0], [], []>} : vector<8x16xf32>, vector<8x16xf32>, vector<8x8xf32> -> vector<8x8xf32>
    %cst_4 = arith.constant dense<0xFF800000> : vector<8xf32>
    %7 = vector.multi_reduction <maximumf>, %6, %cst_4 [1] : vector<8x8xf32> to vector<8xf32>
    %8 = vector.shape_cast %7 : vector<8xf32> to vector<8x1xf32>
    %9 = vector.broadcast %8 : vector<8x1xf32> to vector<8x8xf32>
    %10 = arith.subf %6, %9 : vector<8x8xf32>
    %11 = math.exp %10 : vector<8x8xf32>
    %cst_5 = arith.constant dense<0.000000e+00> : vector<8xf32>
    %12 = vector.multi_reduction <add>, %11, %cst_5 [1] : vector<8x8xf32> to vector<8xf32>
    %13 = vector.shape_cast %12 : vector<8xf32> to vector<8x1xf32>
    %14 = tpu.reciprocal %13 : vector<8x1xf32> -> vector<8x1xf32>
    %15 = vector.broadcast %14 : vector<8x1xf32> to vector<8x8xf32>
    %16 = arith.mulf %11, %15 : vector<8x8xf32>
    %cst_6 = arith.constant dense<0.000000e+00> : vector<8x16xf32>
    %17 = tpu.matmul %16, %5, %cst_6 {dimension_numbers = #tpu.dot_dimension_numbers<[1], [0], [0], [1], [0, 0, 1, 1], [], []>} : vector<8x8xf32>, vector<8x16xf32>, vector<8x16xf32> -> vector<8x16xf32>
    %18 = vector.extract_strided_slice %2 {offsets = [0, 16], sizes = [8, 16], strides = [1, 1]} : vector<16x192xf32> to vector<8x16xf32>
    %19 = vector.extract_strided_slice %2 {offsets = [0, 80], sizes = [8, 16], strides = [1, 1]} : vector<16x192xf32> to vector<8x16xf32>
    %20 = vector.extract_strided_slice %2 {offsets = [0, 144], sizes = [8, 16], strides = [1, 1]} : vector<16x192xf32> to vector<8x16xf32>
    %cst_7 = arith.constant dense<0.000000e+00> : vector<8x8xf32>
    %21 = tpu.matmul %18, %19, %cst_7 {dimension_numbers = #tpu.dot_dimension_numbers<[1], [1], [0], [0], [0, 0, 1, 0], [], []>} : vector<8x16xf32>, vector<8x16xf32>, vector<8x8xf32> -> vector<8x8xf32>
    %cst_8 = arith.constant dense<0xFF800000> : vector<8xf32>
    %22 = vector.multi_reduction <maximumf>, %21, %cst_8 [1] : vector<8x8xf32> to vector<8xf32>
    %23 = vector.shape_cast %22 : vector<8xf32> to vector<8x1xf32>
    %24 = vector.broadcast %23 : vector<8x1xf32> to vector<8x8xf32>
    %25 = arith.subf %21, %24 : vector<8x8xf32>
    %26 = math.exp %25 : vector<8x8xf32>
    %cst_9 = arith.constant dense<0.000000e+00> : vector<8xf32>
    %27 = vector.multi_reduction <add>, %26, %cst_9 [1] : vector<8x8xf32> to vector<8xf32>
    %28 = vector.shape_cast %27 : vector<8xf32> to vector<8x1xf32>
    %29 = tpu.reciprocal %28 : vector<8x1xf32> -> vector<8x1xf32>
    %30 = vector.broadcast %29 : vector<8x1xf32> to vector<8x8xf32>
    %31 = arith.mulf %26, %30 : vector<8x8xf32>
    %cst_10 = arith.constant dense<0.000000e+00> : vector<8x16xf32>
    %32 = tpu.matmul %31, %20, %cst_10 {dimension_numbers = #tpu.dot_dimension_numbers<[1], [0], [0], [1], [0, 0, 1, 1], [], []>} : vector<8x8xf32>, vector<8x16xf32>, vector<8x16xf32> -> vector<8x16xf32>
    %33 = vector.extract_strided_slice %2 {offsets = [0, 32], sizes = [8, 16], strides = [1, 1]} : vector<16x192xf32> to vector<8x16xf32>
    %34 = vector.extract_strided_slice %2 {offsets = [0, 96], sizes = [8, 16], strides = [1, 1]} : vector<16x192xf32> to vector<8x16xf32>
    %35 = vector.extract_strided_slice %2 {offsets = [0, 160], sizes = [8, 16], strides = [1, 1]} : vector<16x192xf32> to vector<8x16xf32>
    %cst_11 = arith.constant dense<0.000000e+00> : vector<8x8xf32>
    %36 = tpu.matmul %33, %34, %cst_11 {dimension_numbers = #tpu.dot_dimension_numbers<[1], [1], [0], [0], [0, 0, 1, 0], [], []>} : vector<8x16xf32>, vector<8x16xf32>, vector<8x8xf32> -> vector<8x8xf32>
    %cst_12 = arith.constant dense<0xFF800000> : vector<8xf32>
    %37 = vector.multi_reduction <maximumf>, %36, %cst_12 [1] : vector<8x8xf32> to vector<8xf32>
    %38 = vector.shape_cast %37 : vector<8xf32> to vector<8x1xf32>
    %39 = vector.broadcast %38 : vector<8x1xf32> to vector<8x8xf32>
    %40 = arith.subf %36, %39 : vector<8x8xf32>
    %41 = math.exp %40 : vector<8x8xf32>
    %cst_13 = arith.constant dense<0.000000e+00> : vector<8xf32>
    %42 = vector.multi_reduction <add>, %41, %cst_13 [1] : vector<8x8xf32> to vector<8xf32>
    %43 = vector.shape_cast %42 : vector<8xf32> to vector<8x1xf32>
    %44 = tpu.reciprocal %43 : vector<8x1xf32> -> vector<8x1xf32>
    %45 = vector.broadcast %44 : vector<8x1xf32> to vector<8x8xf32>
    %46 = arith.mulf %41, %45 : vector<8x8xf32>
    %cst_14 = arith.constant dense<0.000000e+00> : vector<8x16xf32>
    %47 = tpu.matmul %46, %35, %cst_14 {dimension_numbers = #tpu.dot_dimension_numbers<[1], [0], [0], [1], [0, 0, 1, 1], [], []>} : vector<8x8xf32>, vector<8x16xf32>, vector<8x16xf32> -> vector<8x16xf32>
    %48 = vector.extract_strided_slice %2 {offsets = [0, 48], sizes = [8, 16], strides = [1, 1]} : vector<16x192xf32> to vector<8x16xf32>
    %49 = vector.extract_strided_slice %2 {offsets = [0, 112], sizes = [8, 16], strides = [1, 1]} : vector<16x192xf32> to vector<8x16xf32>
    %50 = vector.extract_strided_slice %2 {offsets = [0, 176], sizes = [8, 16], strides = [1, 1]} : vector<16x192xf32> to vector<8x16xf32>
    %cst_15 = arith.constant dense<0.000000e+00> : vector<8x8xf32>
    %51 = tpu.matmul %48, %49, %cst_15 {dimension_numbers = #tpu.dot_dimension_numbers<[1], [1], [0], [0], [0, 0, 1, 0], [], []>} : vector<8x16xf32>, vector<8x16xf32>, vector<8x8xf32> -> vector<8x8xf32>
    %cst_16 = arith.constant dense<0xFF800000> : vector<8xf32>
    %52 = vector.multi_reduction <maximumf>, %51, %cst_16 [1] : vector<8x8xf32> to vector<8xf32>
    %53 = vector.shape_cast %52 : vector<8xf32> to vector<8x1xf32>
    %54 = vector.broadcast %53 : vector<8x1xf32> to vector<8x8xf32>
    %55 = arith.subf %51, %54 : vector<8x8xf32>
    %56 = math.exp %55 : vector<8x8xf32>
    %cst_17 = arith.constant dense<0.000000e+00> : vector<8xf32>
    %57 = vector.multi_reduction <add>, %56, %cst_17 [1] : vector<8x8xf32> to vector<8xf32>
    %58 = vector.shape_cast %57 : vector<8xf32> to vector<8x1xf32>
    %59 = tpu.reciprocal %58 : vector<8x1xf32> -> vector<8x1xf32>
    %60 = vector.broadcast %59 : vector<8x1xf32> to vector<8x8xf32>
    %61 = arith.mulf %56, %60 : vector<8x8xf32>
    %cst_18 = arith.constant dense<0.000000e+00> : vector<8x16xf32>
    %62 = tpu.matmul %61, %50, %cst_18 {dimension_numbers = #tpu.dot_dimension_numbers<[1], [0], [0], [1], [0, 0, 1, 1], [], []>} : vector<8x8xf32>, vector<8x16xf32>, vector<8x16xf32> -> vector<8x16xf32>
    %63 = tpu.concatenate %17, %32, %47, %62 in 1 : vector<8x16xf32>, vector<8x16xf32>, vector<8x16xf32>, vector<8x16xf32> -> vector<8x64xf32>
    %64 = vector.extract_strided_slice %2 {offsets = [8, 0], sizes = [8, 16], strides = [1, 1]} : vector<16x192xf32> to vector<8x16xf32>
    %65 = vector.extract_strided_slice %2 {offsets = [8, 64], sizes = [8, 16], strides = [1, 1]} : vector<16x192xf32> to vector<8x16xf32>
    %66 = vector.extract_strided_slice %2 {offsets = [8, 128], sizes = [8, 16], strides = [1, 1]} : vector<16x192xf32> to vector<8x16xf32>
    %cst_19 = arith.constant dense<0.000000e+00> : vector<8x8xf32>
    %67 = tpu.matmul %64, %65, %cst_19 {dimension_numbers = #tpu.dot_dimension_numbers<[1], [1], [0], [0], [0, 0, 1, 0], [], []>} : vector<8x16xf32>, vector<8x16xf32>, vector<8x8xf32> -> vector<8x8xf32>
    %cst_20 = arith.constant dense<0xFF800000> : vector<8xf32>
    %68 = vector.multi_reduction <maximumf>, %67, %cst_20 [1] : vector<8x8xf32> to vector<8xf32>
    %69 = vector.shape_cast %68 : vector<8xf32> to vector<8x1xf32>
    %70 = vector.broadcast %69 : vector<8x1xf32> to vector<8x8xf32>
    %71 = arith.subf %67, %70 : vector<8x8xf32>
    %72 = math.exp %71 : vector<8x8xf32>
    %cst_21 = arith.constant dense<0.000000e+00> : vector<8xf32>
    %73 = vector.multi_reduction <add>, %72, %cst_21 [1] : vector<8x8xf32> to vector<8xf32>
    %74 = vector.shape_cast %73 : vector<8xf32> to vector<8x1xf32>
    %75 = tpu.reciprocal %74 : vector<8x1xf32> -> vector<8x1xf32>
    %76 = vector.broadcast %75 : vector<8x1xf32> to vector<8x8xf32>
    %77 = arith.mulf %72, %76 : vector<8x8xf32>
    %cst_22 = arith.constant dense<0.000000e+00> : vector<8x16xf32>
    %78 = tpu.matmul %77, %66, %cst_22 {dimension_numbers = #tpu.dot_dimension_numbers<[1], [0], [0], [1], [0, 0, 1, 1], [], []>} : vector<8x8xf32>, vector<8x16xf32>, vector<8x16xf32> -> vector<8x16xf32>
    %79 = vector.extract_strided_slice %2 {offsets = [8, 16], sizes = [8, 16], strides = [1, 1]} : vector<16x192xf32> to vector<8x16xf32>
    %80 = vector.extract_strided_slice %2 {offsets = [8, 80], sizes = [8, 16], strides = [1, 1]} : vector<16x192xf32> to vector<8x16xf32>
    %81 = vector.extract_strided_slice %2 {offsets = [8, 144], sizes = [8, 16], strides = [1, 1]} : vector<16x192xf32> to vector<8x16xf32>
    %cst_23 = arith.constant dense<0.000000e+00> : vector<8x8xf32>
    %82 = tpu.matmul %79, %80, %cst_23 {dimension_numbers = #tpu.dot_dimension_numbers<[1], [1], [0], [0], [0, 0, 1, 0], [], []>} : vector<8x16xf32>, vector<8x16xf32>, vector<8x8xf32> -> vector<8x8xf32>
    %cst_24 = arith.constant dense<0xFF800000> : vector<8xf32>
    %83 = vector.multi_reduction <maximumf>, %82, %cst_24 [1] : vector<8x8xf32> to vector<8xf32>
    %84 = vector.shape_cast %83 : vector<8xf32> to vector<8x1xf32>
    %85 = vector.broadcast %84 : vector<8x1xf32> to vector<8x8xf32>
    %86 = arith.subf %82, %85 : vector<8x8xf32>
    %87 = math.exp %86 : vector<8x8xf32>
    %cst_25 = arith.constant dense<0.000000e+00> : vector<8xf32>
    %88 = vector.multi_reduction <add>, %87, %cst_25 [1] : vector<8x8xf32> to vector<8xf32>
    %89 = vector.shape_cast %88 : vector<8xf32> to vector<8x1xf32>
    %90 = tpu.reciprocal %89 : vector<8x1xf32> -> vector<8x1xf32>
    %91 = vector.broadcast %90 : vector<8x1xf32> to vector<8x8xf32>
    %92 = arith.mulf %87, %91 : vector<8x8xf32>
    %cst_26 = arith.constant dense<0.000000e+00> : vector<8x16xf32>
    %93 = tpu.matmul %92, %81, %cst_26 {dimension_numbers = #tpu.dot_dimension_numbers<[1], [0], [0], [1], [0, 0, 1, 1], [], []>} : vector<8x8xf32>, vector<8x16xf32>, vector<8x16xf32> -> vector<8x16xf32>
    %94 = vector.extract_strided_slice %2 {offsets = [8, 32], sizes = [8, 16], strides = [1, 1]} : vector<16x192xf32> to vector<8x16xf32>
    %95 = vector.extract_strided_slice %2 {offsets = [8, 96], sizes = [8, 16], strides = [1, 1]} : vector<16x192xf32> to vector<8x16xf32>
    %96 = vector.extract_strided_slice %2 {offsets = [8, 160], sizes = [8, 16], strides = [1, 1]} : vector<16x192xf32> to vector<8x16xf32>
    %cst_27 = arith.constant dense<0.000000e+00> : vector<8x8xf32>
    %97 = tpu.matmul %94, %95, %cst_27 {dimension_numbers = #tpu.dot_dimension_numbers<[1], [1], [0], [0], [0, 0, 1, 0], [], []>} : vector<8x16xf32>, vector<8x16xf32>, vector<8x8xf32> -> vector<8x8xf32>
    %cst_28 = arith.constant dense<0xFF800000> : vector<8xf32>
    %98 = vector.multi_reduction <maximumf>, %97, %cst_28 [1] : vector<8x8xf32> to vector<8xf32>
    %99 = vector.shape_cast %98 : vector<8xf32> to vector<8x1xf32>
    %100 = vector.broadcast %99 : vector<8x1xf32> to vector<8x8xf32>
    %101 = arith.subf %97, %100 : vector<8x8xf32>
    %102 = math.exp %101 : vector<8x8xf32>
    %cst_29 = arith.constant dense<0.000000e+00> : vector<8xf32>
    %103 = vector.multi_reduction <add>, %102, %cst_29 [1] : vector<8x8xf32> to vector<8xf32>
    %104 = vector.shape_cast %103 : vector<8xf32> to vector<8x1xf32>
    %105 = tpu.reciprocal %104 : vector<8x1xf32> -> vector<8x1xf32>
    %106 = vector.broadcast %105 : vector<8x1xf32> to vector<8x8xf32>
    %107 = arith.mulf %102, %106 : vector<8x8xf32>
    %cst_30 = arith.constant dense<0.000000e+00> : vector<8x16xf32>
    %108 = tpu.matmul %107, %96, %cst_30 {dimension_numbers = #tpu.dot_dimension_numbers<[1], [0], [0], [1], [0, 0, 1, 1], [], []>} : vector<8x8xf32>, vector<8x16xf32>, vector<8x16xf32> -> vector<8x16xf32>
    %109 = vector.extract_strided_slice %2 {offsets = [8, 48], sizes = [8, 16], strides = [1, 1]} : vector<16x192xf32> to vector<8x16xf32>
    %110 = vector.extract_strided_slice %2 {offsets = [8, 112], sizes = [8, 16], strides = [1, 1]} : vector<16x192xf32> to vector<8x16xf32>
    %111 = vector.extract_strided_slice %2 {offsets = [8, 176], sizes = [8, 16], strides = [1, 1]} : vector<16x192xf32> to vector<8x16xf32>
    %cst_31 = arith.constant dense<0.000000e+00> : vector<8x8xf32>
    %112 = tpu.matmul %109, %110, %cst_31 {dimension_numbers = #tpu.dot_dimension_numbers<[1], [1], [0], [0], [0, 0, 1, 0], [], []>} : vector<8x16xf32>, vector<8x16xf32>, vector<8x8xf32> -> vector<8x8xf32>
    %cst_32 = arith.constant dense<0xFF800000> : vector<8xf32>
    %113 = vector.multi_reduction <maximumf>, %112, %cst_32 [1] : vector<8x8xf32> to vector<8xf32>
    %114 = vector.shape_cast %113 : vector<8xf32> to vector<8x1xf32>
    %115 = vector.broadcast %114 : vector<8x1xf32> to vector<8x8xf32>
    %116 = arith.subf %112, %115 : vector<8x8xf32>
    %117 = math.exp %116 : vector<8x8xf32>
    %cst_33 = arith.constant dense<0.000000e+00> : vector<8xf32>
    %118 = vector.multi_reduction <add>, %117, %cst_33 [1] : vector<8x8xf32> to vector<8xf32>
    %119 = vector.shape_cast %118 : vector<8xf32> to vector<8x1xf32>
    %120 = tpu.reciprocal %119 : vector<8x1xf32> -> vector<8x1xf32>
    %121 = vector.broadcast %120 : vector<8x1xf32> to vector<8x8xf32>
    %122 = arith.mulf %117, %121 : vector<8x8xf32>
    %cst_34 = arith.constant dense<0.000000e+00> : vector<8x16xf32>
    %123 = tpu.matmul %122, %111, %cst_34 {dimension_numbers = #tpu.dot_dimension_numbers<[1], [0], [0], [1], [0, 0, 1, 1], [], []>} : vector<8x8xf32>, vector<8x16xf32>, vector<8x16xf32> -> vector<8x16xf32>
    %124 = tpu.concatenate %78, %93, %108, %123 in 1 : vector<8x16xf32>, vector<8x16xf32>, vector<8x16xf32>, vector<8x16xf32> -> vector<8x64xf32>
    %125 = tpu.concatenate %63, %124 in 0 : vector<8x64xf32>, vector<8x64xf32> -> vector<16x64xf32>
    %c0_35 = arith.constant 0 : index
    %c0_36 = arith.constant 0 : index
    %126 = vector.load %arg3[%c0_35, %c0_36] : memref<64x32xf32, #tpu.memory_space<vmem>>, vector<64x32xf32>
    %cst_37 = arith.constant dense<0.000000e+00> : vector<16x32xf32>
    %127 = tpu.matmul %125, %126, %cst_37 {dimension_numbers = #tpu.dot_dimension_numbers<[1], [0], [0], [1], [0, 0, 1, 1], [], []>} : vector<16x64xf32>, vector<64x32xf32>, vector<16x32xf32> -> vector<16x32xf32>
    %c0_38 = arith.constant 0 : index
    %c0_39 = arith.constant 0 : index
    %128 = vector.load %arg4[%c0_38, %c0_39] : memref<1x32xf32, #tpu.memory_space<vmem>>, vector<1x32xf32>
    %129 = vector.broadcast %128 : vector<1x32xf32> to vector<16x32xf32>
    %130 = arith.addf %127, %129 : vector<16x32xf32>
    %c0_40 = arith.constant 0 : index
    %c0_41 = arith.constant 0 : index
    %131 = vector.load %arg5[%c0_40, %c0_41] : memref<16x32xf32, #tpu.memory_space<vmem>>, vector<16x32xf32>
    tpu.vector_store %arg5[%c0_40, %c0_41], %130 {strides = array<i32>} : memref<16x32xf32, #tpu.memory_space<vmem>>, vector<16x32xf32>,
    return
  }
  func.func @transform_0(%arg0: i32) -> (i32, i32) {
    %c0_i32 = arith.constant 0 : i32
    %c0_i32_0 = arith.constant 0 : i32
    %c0_i32_1 = arith.constant 0 : i32
    return %c0_i32, %c0_i32_0 : i32, i32
  }
  func.func @transform_1(%arg0: i32) -> (i32, i32) {
    %c0_i32 = arith.constant 0 : i32
    %c0_i32_0 = arith.constant 0 : i32
    %c0_i32_1 = arith.constant 0 : i32
    return %c0_i32, %c0_i32_0 : i32, i32
  }
  func.func @transform_2(%arg0: i32) -> (i32, i32) {
    %c0_i32 = arith.constant 0 : i32
    %c0_i32_0 = arith.constant 0 : i32
    %c0_i32_1 = arith.constant 0 : i32
    return %c0_i32, %c0_i32_0 : i32, i32
  }
  func.func @transform_3(%arg0: i32) -> (i32, i32) {
    %c0_i32 = arith.constant 0 : i32
    %c0_i32_0 = arith.constant 0 : i32
    %c0_i32_1 = arith.constant 0 : i32
    return %c0_i32, %c0_i32_0 : i32, i32
  }
  func.func @transform_4(%arg0: i32) -> (i32, i32) {
    %c0_i32 = arith.constant 0 : i32
    %c0_i32_0 = arith.constant 0 : i32
    %c0_i32_1 = arith.constant 0 : i32
    return %c0_i32, %c0_i32_0 : i32, i32
  }
}

</mosaic_0001>

<llo_original>
// kernel: tpu_custom_call.1
$region0: #{tpu_custom_call.1}
  #allocation0 [shape = 'u32[]', space=smem, size = 0x4, offset = 0x4, fixed_abs, tag = 'smem constant byte address 0x4 - core index']
  #allocation1 [shape = 'u32[144,128]{1,0:T(1,128)}', space=vmem, size = 0x12000, scoped, tag = 'internal scratch']
  %s0 = inlined_call_operand.vmem [shape: f32[16,32], index: 0, kind: input, shape index: {}]
  %s1 = inlined_call_operand.vmem [shape: f32[32,192], index: 1, kind: input, shape index: {}]
  %s2 = inlined_call_operand.vmem [shape: f32[64,32], index: 2, kind: input, shape index: {}]
  %s3 = inlined_call_operand.vmem [shape: f32[1,32], index: 3, kind: input, shape index: {}]
  %s4 = inlined_call_operand.hbm [shape: f32[16,32], index: 4, kind: output, shape index: {}]
  %s5 = sld [smem:[#allocation0]]
  $region26: #{tpu_custom_call.1} parent=0
    _
  %s7 = ssub.s32 1, %s5
  %s8 = scalar_select 0, %s7, %s5
  $region1: #{tpu_custom_call.1} parent=0
    #allocation2 [shape = 'u8[8192]{0}', space=vmem, size = 0x2000, scoped, tag = 'output window, operand 0, single buffered']
    #allocation3 [shape = 's32[1]{0}', space=sflag, size = 0x4, scoped, tag = 'scoped memory for tpu_custom_call.1']
    %9 = vsyncpa [#allocation3], 0
    // Predicated region
    $region2: #{tpu_custom_call.1} parent=1 // pred_check
      _
    $region3: #{tpu_custom_call.1} parent=1 // pred_check_branch
      %11 = sbr.rel (0) target = $region5
    $region4: #{tpu_custom_call.1} parent=1 // pred_region
      _
    $region5: #{tpu_custom_call.1} parent=1 // pred_fallthru
      _
    // Predicated region
    $region6: #{tpu_custom_call.1} parent=1 // pred_check
      _
    $region7: #{tpu_custom_call.1} parent=1 // pred_check_branch
      %13 = sbr.rel (0) target = $region9
    $region8: #{tpu_custom_call.1} parent=1 // pred_region
      _
    $region9: #{tpu_custom_call.1} parent=1 // pred_fallthru
      _
    // Predicated region
    $region10: #{tpu_custom_call.1} parent=1 // pred_check
      _
    $region11: #{tpu_custom_call.1} parent=1 // pred_check_branch
      %15 = sbr.rel (0) target = $region13
    $region12: #{tpu_custom_call.1} parent=1 // pred_region
      _
    $region13: #{tpu_custom_call.1} parent=1 // pred_fallthru
      _
    // Predicated region
    $region14: #{tpu_custom_call.1} parent=1 // pred_check
      _
    $region15: #{tpu_custom_call.1} parent=1 // pred_check_branch
      %17 = sbr.rel (0) target = $region17
    $region16: #{tpu_custom_call.1} parent=1 // pred_region
      _
    $region17: #{tpu_custom_call.1} parent=1 // pred_fallthru
      _
    %v18 = vld [vmem:[%s0] sm:$0xff]
    %v19 = vld [vmem:[%s0 + $0x8] sm:$0xff]
    %v20 = vld [vmem:[%s1] sm:$0xff]
    %v21 = vld [vmem:[%s1 + $0x8] sm:$0xff]
    %v22 = vld [vmem:[%s1 + $0x10] sm:$0xff]
    %v23 = vld [vmem:[%s1 + $0x18] sm:$0xff]
    %v24 = vld [vmem:[%s1 + $0x20] sm:$0xff]
    %v25 = vld [vmem:[%s1 + $0x28] sm:$0xff]
    %v26 = vld [vmem:[%s1 + $0x30] sm:$0xff]
    %v27 = vld [vmem:[%s1 + $0x38] sm:$0xff]
    %vm28 = vcmask 261120
    %v30 = vsel %vm28, %v18, 0
    %v33 = vsel %vm28, %v19, 0
    %35 = vmatprep.subr.mxu0 %v21
    %36 = vmatpush1.msra.mxu0 %v20
    %37 = vmatprep.subr.mxu0 %v23
    %38 = vmatpush1.msra.mxu0 %v22
    %39 = vmatprep.subr.mxu0 %v25
    %40 = vmatpush1.msra.mxu0 %v24
    %41 = vmatprep.subr.mxu0 %v27
    %42 = vmatpush1.msra.mxu0 %v26
    %43 = vmatprep.subr.mxu0 0.0
    %44 = vmatpush1.msra.mxu0 0.0
    %45 = vmatprep.subr.mxu0 0.0
    %46 = vmatpush1.msra.mxu0 0.0
    %47 = vmatprep.subr.mxu0 0.0
    %48 = vmatpush1.msra.mxu0 0.0
    %49 = vmatprep.subr.mxu0 0.0
    %50 = vmatpush1.msra.mxu0 0.0
    %51 = vmatprep.subr.mxu0 0.0
    %52 = vmatpush1.msra.mxu0 0.0
    %53 = vmatprep.subr.mxu0 0.0
    %54 = vmatpush1.msra.mxu0 0.0
    %55 = vmatprep.subr.mxu0 0.0
    %56 = vmatpush1.msra.mxu0 0.0
    %57 = vmatprep.subr.mxu0 0.0
    %58 = vmatpush1.msra.mxu0 0.0
    %59 = vmatprep.subr.mxu0 0.0
    %60 = vmatpush1.msra.mxu0 0.0
    %61 = vmatprep.subr.mxu0 0.0
    %62 = vmatpush1.msra.mxu0 0.0
    %63 = vmatprep.subr.mxu0 0.0
    %64 = vmatpush1.msra.mxu0 0.0
    %65 = vmatprep.subr.mxu0 0.0
    %66 = vmatpush1.msra.mxu0 0.0
    %67 = vmatprep.subr.mxu0 0.0
    %68 = vmatpush1.msra.mxu0 0.0
    %69 = vmatprep.subr.mxu0 0.0
    %70 = vmatpush1.msra.mxu0 0.0
    %71 = vmatprep.subr.mxu0 0.0
    %72 = vmatpush1.msra.mxu0 0.0
    %73 = vmatprep.subr.mxu0 0.0
    %74 = vmatpush1.msra.mxu0 0.0
    %75 = vmatprep.subr.mxu0 0.0
    %76 = vmatpush1.msra.mxu0 0.0
    %77 = vmatprep.subr.mxu0 0.0
    %78 = vmatpush1.msra.mxu0 0.0
    %79 = vmatprep.subr.mxu0 0.0
    %80 = vmatpush1.msra.mxu0 0.0
    %81 = vmatprep.subr.mxu0 0.0
    %82 = vmatpush1.msra.mxu0 0.0
    %83 = vmatprep.subr.mxu0 0.0
    %84 = vmatpush1.msra.mxu0 0.0
    %85 = vmatprep.subr.mxu0 0.0
    %86 = vmatpush1.msra.mxu0 0.0
    %87 = vmatprep.subr.mxu0 0.0
    %88 = vmatpush1.msra.mxu0 0.0
    %89 = vmatprep.subr.mxu0 0.0
    %90 = vmatpush1.msra.mxu0 0.0
    %91 = vmatprep.subr.mxu0 0.0
    %92 = vmatpush1.msra.mxu0 0.0
    %93 = vmatprep.subr.mxu0 0.0
    %94 = vmatpush1.msra.mxu0 0.0
    %95 = vmatprep.subr.mxu0 0.0
    %96 = vmatpush1.msra.mxu0 0.0
    %97 = vmatprep.subr.mxu0 0.0
    %98 = vmatpush1.msra.mxu0 0.0
    %99 = vmatprep.mubr.f32.mxu0 0.0
    %100 = vmatmul.mubr.f32.gmra.mrb[0].mxu0 %v30
    %v101 = vpop.f32.mrb[0].mxu0
    %v102 = vadd.f32 0.0, %v101
    %v103 = vpop.f32.mrb[0].mxu0
    %v104 = vadd.f32 0.0, %v103
    %105 = vmatprep.mubr.f32.mxu0 0.0
    %106 = vmatmul.mubr.f32.gmra.mrb[0].mxu0 %v33
    %v107 = vpop.f32.mrb[0].mxu0
    %v108 = vadd.f32 0.0, %v107
    %v109 = vpop.f32.mrb[0].mxu0
    %v110 = vadd.f32 0.0, %v109
    %111 = vdwg.mxu0
    %113 = vrot.lane.b32.xlu0 %v102, 64
    %v114 = vpop.permute.xlu0 %113
    %vm115 = vcmask 130048
    %v116 = vsel %vm115, %v102, 0
    %v118 = vsel %vm115, %v114, 0
    %120 = vmatprep.subr.mxu0 0.0
    %121 = vmatpush1.xpose.msra.mxu0 %v118
    %122 = vmatprep.subr.mxu0 0.0
    %123 = vmatpush1.xpose.msra.mxu0 0.0
    %124 = vmatprep.subr.mxu0 0.0
    %125 = vmatpush1.xpose.msra.mxu0 0.0
    %126 = vmatprep.subr.mxu0 0.0
    %127 = vmatpush1.xpose.msra.mxu0 0.0
    %128 = vmatprep.subr.mxu0 0.0
    %129 = vmatpush1.xpose.msra.mxu0 0.0
    %130 = vmatprep.subr.mxu0 0.0
    %131 = vmatpush1.xpose.msra.mxu0 0.0
    %132 = vmatprep.subr.mxu0 0.0
    %133 = vmatpush1.xpose.msra.mxu0 0.0
    %134 = vmatprep.subr.mxu0 0.0
    %135 = vmatpush1.xpose.msra.mxu0 0.0
    %136 = vmatprep.subr.mxu0 0.0
    %137 = vmatpush1.xpose.msra.mxu0 0.0
    %138 = vmatprep.subr.mxu0 0.0
    %139 = vmatpush1.xpose.msra.mxu0 0.0
    %140 = vmatprep.subr.mxu0 0.0
    %141 = vmatpush1.xpose.msra.mxu0 0.0
    %142 = vmatprep.subr.mxu0 0.0
    %143 = vmatpush1.xpose.msra.mxu0 0.0
    %144 = vmatprep.subr.mxu0 0.0
    %145 = vmatpush1.xpose.msra.mxu0 0.0
    %146 = vmatprep.subr.mxu0 0.0
    %147 = vmatpush1.xpose.msra.mxu0 0.0
    %148 = vmatprep.subr.mxu0 0.0
    %149 = vmatpush1.xpose.msra.mxu0 0.0
    %150 = vmatprep.subr.mxu0 0.0
    %151 = vmatpush1.xpose.msra.mxu0 0.0
    %152 = vmatprep.subr.mxu0 0.0
    %153 = vmatpush1.xpose.msra.mxu0 0.0
    %154 = vmatprep.subr.mxu0 0.0
    %155 = vmatpush1.xpose.msra.mxu0 0.0
    %156 = vmatprep.subr.mxu0 0.0
    %157 = vmatpush1.xpose.msra.mxu0 0.0
    %158 = vmatprep.subr.mxu0 0.0
    %159 = vmatpush1.xpose.msra.mxu0 0.0
    %160 = vmatprep.subr.mxu0 0.0
    %161 = vmatpush1.xpose.msra.mxu0 0.0
    %162 = vmatprep.subr.mxu0 0.0
    %163 = vmatpush1.xpose.msra.mxu0 0.0
    %164 = vmatprep.subr.mxu0 0.0
    %165 = vmatpush1.xpose.msra.mxu0 0.0
    %166 = vmatprep.subr.mxu0 0.0
    %167 = vmatpush1.xpose.msra.mxu0 0.0
    %168 = vmatprep.subr.mxu0 0.0
    %169 = vmatpush1.xpose.msra.mxu0 0.0
    %170 = vmatprep.subr.mxu0 0.0
    %171 = vmatpush1.xpose.msra.mxu0 0.0
    %172 = vmatprep.subr.mxu0 0.0
    %173 = vmatpush1.xpose.msra.mxu0 0.0
    %174 = vmatprep.subr.mxu0 0.0
    %175 = vmatpush1.xpose.msra.mxu0 0.0
    %176 = vmatprep.subr.mxu0 0.0
    %177 = vmatpush1.xpose.msra.mxu0 0.0
    %178 = vmatprep.subr.mxu0 0.0
    %179 = vmatpush1.xpose.msra.mxu0 0.0
    %180 = vmatprep.subr.mxu0 0.0
    %181 = vmatpush1.xpose.msra.mxu0 0.0
    %182 = vmatprep.subr.mxu0 0.0
    %183 = vmatpush1.xpose.msra.mxu0 0.0
    %184 = vmatprep.mubr.f32.mxu0 0.0
    %185 = vmatmul.mubr.f32.gmra.mrb[0].mxu0 %v116
    %v186 = vpop.f32.mrb[0].mxu0
    %v187 = vadd.f32 0.0, %v186
    %v188 = vpop.f32.mrb[0].mxu0
    %189 = vdwg.mxu0
    %vm190 = vcmask 64512
    %v191 = vsel %vm190, %v187, -inf
    %192 = vmax.xlane.f32.xlu0 %v191
    %v193 = vpop.xlane.xlu0 %192
    %v194 = vsub.f32 %v187, %v193
    %v195 = vmul.f32 %v194, 1.442695
    %v196 = vpow.pop %v195
    %v197 = vsel %vm190, %v196, 0.0
    %198 = vadd.xlane.f32.xlu0 %v197
    %v199 = vpop.xlane.xlu0 %198
    %v200 = vrcp.pop %v199
    %v201 = vmul.f32 %v196, %v200
    %v203 = vsel %vm190, %v201, 0
    %205 = vmatprep.subr.mxu0 0.0
    %206 = vmatpush1.msra.mxu0 %v104
    %207 = vmatprep.subr.mxu0 0.0
    %208 = vmatpush1.msra.mxu0 0.0
    %209 = vmatprep.subr.mxu0 0.0
    %210 = vmatpush1.msra.mxu0 0.0
    %211 = vmatprep.subr.mxu0 0.0
    %212 = vmatpush1.msra.mxu0 0.0
    %213 = vmatprep.subr.mxu0 0.0
    %214 = vmatpush1.msra.mxu0 0.0
    %215 = vmatprep.subr.mxu0 0.0
    %216 = vmatpush1.msra.mxu0 0.0
    %217 = vmatprep.subr.mxu0 0.0
    %218 = vmatpush1.msra.mxu0 0.0
    %219 = vmatprep.subr.mxu0 0.0
    %220 = vmatpush1.msra.mxu0 0.0
    %221 = vmatprep.subr.mxu0 0.0
    %222 = vmatpush1.msra.mxu0 0.0
    %223 = vmatprep.subr.mxu0 0.0
    %224 = vmatpush1.msra.mxu0 0.0
    %225 = vmatprep.subr.mxu0 0.0
    %226 = vmatpush1.msra.mxu0 0.0
    %227 = vmatprep.subr.mxu0 0.0
    %228 = vmatpush1.msra.mxu0 0.0
    %229 = vmatprep.subr.mxu0 0.0
    %230 = vmatpush1.msra.mxu0 0.0
    %231 = vmatprep.subr.mxu0 0.0
    %232 = vmatpush1.msra.mxu0 0.0
    %233 = vmatprep.subr.mxu0 0.0
    %234 = vmatpush1.msra.mxu0 0.0
    %235 = vmatprep.subr.mxu0 0.0
    %236 = vmatpush1.msra.mxu0 0.0
    %237 = vmatprep.subr.mxu0 0.0
    %238 = vmatpush1.msra.mxu0 0.0
    %239 = vmatprep.subr.mxu0 0.0
    %240 = vmatpush1.msra.mxu0 0.0
    %241 = vmatprep.subr.mxu0 0.0
    %242 = vmatpush1.msra.mxu0 0.0
    %243 = vmatprep.subr.mxu0 0.0
    %244 = vmatpush1.msra.mxu0 0.0
    %245 = vmatprep.subr.mxu0 0.0
    %246 = vmatpush1.msra.mxu0 0.0
    %247 = vmatprep.subr.mxu0 0.0
    %248 = vmatpush1.msra.mxu0 0.0
    %249 = vmatprep.subr.mxu0 0.0
    %250 = vmatpush1.msra.mxu0 0.0
    %251 = vmatprep.subr.mxu0 0.0
    %252 = vmatpush1.msra.mxu0 0.0
    %253 = vmatprep.subr.mxu0 0.0
    %254 = vmatpush1.msra.mxu0 0.0
    %255 = vmatprep.subr.mxu0 0.0
    %256 = vmatpush1.msra.mxu0 0.0
    %257 = vmatprep.subr.mxu0 0.0
    %258 = vmatpush1.msra.mxu0 0.0
    %259 = vmatprep.subr.mxu0 0.0
    %260 = vmatpush1.msra.mxu0 0.0
    %261 = vmatprep.subr.mxu0 0.0
    %262 = vmatpush1.msra.mxu0 0.0
    %263 = vmatprep.subr.mxu0 0.0
    %264 = vmatpush1.msra.mxu0 0.0
    %265 = vmatprep.subr.mxu0 0.0
    %266 = vmatpush1.msra.mxu0 0.0
    %267 = vmatprep.subr.mxu0 0.0
    %268 = vmatpush1.msra.mxu0 0.0
    %269 = vmatprep.mubr.f32.mxu0 0.0
    %270 = vmatmul.mubr.f32.gmra.mrb[0].mxu0 %v203
    %v271 = vpop.f32.mrb[0].mxu0
    %v272 = vadd.f32 0.0, %v271
    %v273 = vpop.f32.mrb[0].mxu0
    %274 = vdwg.mxu0
    %275 = vrot.lane.b32.xlu0 %v102, 112
    %v276 = vpop.permute.xlu0 %275
    %277 = vrot.lane.b32.xlu0 %v102, 48
    %v278 = vpop.permute.xlu0 %277
    %v279 = vsel %vm115, %v276, 0
    %v281 = vsel %vm115, %v278, 0
    %283 = vmatprep.subr.mxu0 0.0
    %284 = vmatpush1.xpose.msra.mxu0 %v281
    %285 = vmatprep.subr.mxu0 0.0
    %286 = vmatpush1.xpose.msra.mxu0 0.0
    %287 = vmatprep.subr.mxu0 0.0
    %288 = vmatpush1.xpose.msra.mxu0 0.0
    %289 = vmatprep.subr.mxu0 0.0
    %290 = vmatpush1.xpose.msra.mxu0 0.0
    %291 = vmatprep.subr.mxu0 0.0
    %292 = vmatpush1.xpose.msra.mxu0 0.0
    %293 = vmatprep.subr.mxu0 0.0
    %294 = vmatpush1.xpose.msra.mxu0 0.0
    %295 = vmatprep.subr.mxu0 0.0
    %296 = vmatpush1.xpose.msra.mxu0 0.0
    %297 = vmatprep.subr.mxu0 0.0
    %298 = vmatpush1.xpose.msra.mxu0 0.0
    %299 = vmatprep.subr.mxu0 0.0
    %300 = vmatpush1.xpose.msra.mxu0 0.0
    %301 = vmatprep.subr.mxu0 0.0
    %302 = vmatpush1.xpose.msra.mxu0 0.0
    %303 = vmatprep.subr.mxu0 0.0
    %304 = vmatpush1.xpose.msra.mxu0 0.0
    %305 = vmatprep.subr.mxu0 0.0
    %306 = vmatpush1.xpose.msra.mxu0 0.0
    %307 = vmatprep.subr.mxu0 0.0
    %308 = vmatpush1.xpose.msra.mxu0 0.0
    %309 = vmatprep.subr.mxu0 0.0
    %310 = vmatpush1.xpose.msra.mxu0 0.0
    %311 = vmatprep.subr.mxu0 0.0
    %312 = vmatpush1.xpose.msra.mxu0 0.0
    %313 = vmatprep.subr.mxu0 0.0
    %314 = vmatpush1.xpose.msra.mxu0 0.0
    %315 = vmatprep.subr.mxu0 0.0
    %316 = vmatpush1.xpose.msra.mxu0 0.0
    %317 = vmatprep.subr.mxu0 0.0
    %318 = vmatpush1.xpose.msra.mxu0 0.0
    %319 = vmatprep.subr.mxu0 0.0
    %320 = vmatpush1.xpose.msra.mxu0 0.0
    %321 = vmatprep.subr.mxu0 0.0
    %322 = vmatpush1.xpose.msra.mxu0 0.0
    %323 = vmatprep.subr.mxu0 0.0
    %324 = vmatpush1.xpose.msra.mxu0 0.0
    %325 = vmatprep.subr.mxu0 0.0
    %326 = vmatpush1.xpose.msra.mxu0 0.0
    %327 = vmatprep.subr.mxu0 0.0
    %328 = vmatpush1.xpose.msra.mxu0 0.0
    %329 = vmatprep.subr.mxu0 0.0
    %330 = vmatpush1.xpose.msra.mxu0 0.0
    %331 = vmatprep.subr.mxu0 0.0
    %332 = vmatpush1.xpose.msra.mxu0 0.0
    %333 = vmatprep.subr.mxu0 0.0
    %334 = vmatpush1.xpose.msra.mxu0 0.0
    %335 = vmatprep.subr.mxu0 0.0
    %336 = vmatpush1.xpose.msra.mxu0 0.0
    %337 = vmatprep.subr.mxu0 0.0
    %338 = vmatpush1.xpose.msra.mxu0 0.0
    %339 = vmatprep.subr.mxu0 0.0
    %340 = vmatpush1.xpose.msra.mxu0 0.0
    %341 = vmatprep.subr.mxu0 0.0
    %342 = vmatpush1.xpose.msra.mxu0 0.0
    %343 = vmatprep.subr.mxu0 0.0
    %344 = vmatpush1.xpose.msra.mxu0 0.0
    %345 = vmatprep.subr.mxu0 0.0
    %346 = vmatpush1.xpose.msra.mxu0 0.0
    %347 = vmatprep.mubr.f32.mxu0 0.0
    %348 = vmatmul.mubr.f32.gmra.mrb[0].mxu0 %v279
    %v349 = vpop.f32.mrb[0].mxu0
    %v350 = vadd.f32 0.0, %v349
    %v351 = vpop.f32.mrb[0].mxu0
    %352 = vdwg.mxu0
    %v353 = vsel %vm190, %v350, -inf
    %354 = vmax.xlane.f32.xlu0 %v353
    %v355 = vpop.xlane.xlu0 %354
    %v356 = vsub.f32 %v350, %v355
    %v357 = vmul.f32 %v356, 1.442695
    %v358 = vpow.pop %v357
    %v359 = vsel %vm190, %v358, 0.0
    %360 = vadd.xlane.f32.xlu0 %v359
    %v361 = vpop.xlane.xlu0 %360
    %v362 = vrcp.pop %v361
    %v363 = vmul.f32 %v358, %v362
    %365 = vrot.lane.b32.xlu0 %v104, 112
    %v366 = vpop.permute.xlu0 %365
    %v369 = vsel %vm190, %v363, 0
    %371 = vmatprep.subr.mxu0 0.0
    %372 = vmatpush1.msra.mxu0 %v366
    %373 = vmatprep.subr.mxu0 0.0
    %374 = vmatpush1.msra.mxu0 0.0
    %375 = vmatprep.subr.mxu0 0.0
    %376 = vmatpush1.msra.mxu0 0.0
    %377 = vmatprep.subr.mxu0 0.0
    %378 = vmatpush1.msra.mxu0 0.0
    %379 = vmatprep.subr.mxu0 0.0
    %380 = vmatpush1.msra.mxu0 0.0
    %381 = vmatprep.subr.mxu0 0.0
    %382 = vmatpush1.msra.mxu0 0.0
    %383 = vmatprep.subr.mxu0 0.0
    %384 = vmatpush1.msra.mxu0 0.0
    %385 = vmatprep.subr.mxu0 0.0
    %386 = vmatpush1.msra.mxu0 0.0
    %387 = vmatprep.subr.mxu0 0.0
    %388 = vmatpush1.msra.mxu0 0.0
    %389 = vmatprep.subr.mxu0 0.0
    %390 = vmatpush1.msra.mxu0 0.0
    %391 = vmatprep.subr.mxu0 0.0
    %392 = vmatpush1.msra.mxu0 0.0
    %393 = vmatprep.subr.mxu0 0.0
    %394 = vmatpush1.msra.mxu0 0.0
    %395 = vmatprep.subr.mxu0 0.0
    %396 = vmatpush1.msra.mxu0 0.0
    %397 = vmatprep.subr.mxu0 0.0
    %398 = vmatpush1.msra.mxu0 0.0
    %399 = vmatprep.subr.mxu0 0.0
    %400 = vmatpush1.msra.mxu0 0.0
    %401 = vmatprep.subr.mxu0 0.0
    %402 = vmatpush1.msra.mxu0 0.0
    %403 = vmatprep.subr.mxu0 0.0
    %404 = vmatpush1.msra.mxu0 0.0
    %405 = vmatprep.subr.mxu0 0.0
    %406 = vmatpush1.msra.mxu0 0.0
    %407 = vmatprep.subr.mxu0 0.0
    %408 = vmatpush1.msra.mxu0 0.0
    %409 = vmatprep.subr.mxu0 0.0
    %410 = vmatpush1.msra.mxu0 0.0
    %411 = vmatprep.subr.mxu0 0.0
    %412 = vmatpush1.msra.mxu0 0.0
    %413 = vmatprep.subr.mxu0 0.0
    %414 = vmatpush1.msra.mxu0 0.0
    %415 = vmatprep.subr.mxu0 0.0
    %416 = vmatpush1.msra.mxu0 0.0
    %417 = vmatprep.subr.mxu0 0.0
    %418 = vmatpush1.msra.mxu0 0.0
    %419 = vmatprep.subr.mxu0 0.0
    %420 = vmatpush1.msra.mxu0 0.0
    %421 = vmatprep.subr.mxu0 0.0
    %422 = vmatpush1.msra.mxu0 0.0
    %423 = vmatprep.subr.mxu0 0.0
    %424 = vmatpush1.msra.mxu0 0.0
    %425 = vmatprep.subr.mxu0 0.0
    %426 = vmatpush1.msra.mxu0 0.0
    %427 = vmatprep.subr.mxu0 0.0
    %428 = vmatpush1.msra.mxu0 0.0
    %429 = vmatprep.subr.mxu0 0.0
    %430 = vmatpush1.msra.mxu0 0.0
    %431 = vmatprep.subr.mxu0 0.0
    %432 = vmatpush1.msra.mxu0 0.0
    %433 = vmatprep.subr.mxu0 0.0
    %434 = vmatpush1.msra.mxu0 0.0
    %435 = vmatprep.mubr.f32.mxu0 0.0
    %436 = vmatmul.mubr.f32.gmra.mrb[0].mxu0 %v369
    %v437 = vpop.f32.mrb[0].mxu0
    %v438 = vadd.f32 0.0, %v437
    %v439 = vpop.f32.mrb[0].mxu0
    %440 = vdwg.mxu0
    %441 = vrot.lane.b32.xlu0 %v102, 96
    %v442 = vpop.permute.xlu0 %441
    %443 = vrot.lane.b32.xlu0 %v102, 32
    %v444 = vpop.permute.xlu0 %443
    %v445 = vsel %vm115, %v442, 0
    %v447 = vsel %vm115, %v444, 0
    %449 = vmatprep.subr.mxu0 0.0
    %450 = vmatpush1.xpose.msra.mxu0 %v447
    %451 = vmatprep.subr.mxu0 0.0
    %452 = vmatpush1.xpose.msra.mxu0 0.0
    %453 = vmatprep.subr.mxu0 0.0
    %454 = vmatpush1.xpose.msra.mxu0 0.0
    %455 = vmatprep.subr.mxu0 0.0
    %456 = vmatpush1.xpose.msra.mxu0 0.0
    %457 = vmatprep.subr.mxu0 0.0
    %458 = vmatpush1.xpose.msra.mxu0 0.0
    %459 = vmatprep.subr.mxu0 0.0
    %460 = vmatpush1.xpose.msra.mxu0 0.0
    %461 = vmatprep.subr.mxu0 0.0
    %462 = vmatpush1.xpose.msra.mxu0 0.0
    %463 = vmatprep.subr.mxu0 0.0
    %464 = vmatpush1.xpose.msra.mxu0 0.0
    %465 = vmatprep.subr.mxu0 0.0
    %466 = vmatpush1.xpose.msra.mxu0 0.0
    %467 = vmatprep.subr.mxu0 0.0
    %468 = vmatpush1.xpose.msra.mxu0 0.0
    %469 = vmatprep.subr.mxu0 0.0
    %470 = vmatpush1.xpose.msra.mxu0 0.0
    %471 = vmatprep.subr.mxu0 0.0
    %472 = vmatpush1.xpose.msra.mxu0 0.0
    %473 = vmatprep.subr.mxu0 0.0
    %474 = vmatpush1.xpose.msra.mxu0 0.0
    %475 = vmatprep.subr.mxu0 0.0
    %476 = vmatpush1.xpose.msra.mxu0 0.0
    %477 = vmatprep.subr.mxu0 0.0
    %478 = vmatpush1.xpose.msra.mxu0 0.0
    %479 = vmatprep.subr.mxu0 0.0
    %480 = vmatpush1.xpose.msra.mxu0 0.0
    %481 = vmatprep.subr.mxu0 0.0
    %482 = vmatpush1.xpose.msra.mxu0 0.0
    %483 = vmatprep.subr.mxu0 0.0
    %484 = vmatpush1.xpose.msra.mxu0 0.0
    %485 = vmatprep.subr.mxu0 0.0
    %486 = vmatpush1.xpose.msra.mxu0 0.0
    %487 = vmatprep.subr.mxu0 0.0
    %488 = vmatpush1.xpose.msra.mxu0 0.0
    %489 = vmatprep.subr.mxu0 0.0
    %490 = vmatpush1.xpose.msra.mxu0 0.0
    %491 = vmatprep.subr.mxu0 0.0
    %492 = vmatpush1.xpose.msra.mxu0 0.0
    %493 = vmatprep.subr.mxu0 0.0
    %494 = vmatpush1.xpose.msra.mxu0 0.0
    %495 = vmatprep.subr.mxu0 0.0
    %496 = vmatpush1.xpose.msra.mxu0 0.0
    %497 = vmatprep.subr.mxu0 0.0
    %498 = vmatpush1.xpose.msra.mxu0 0.0
    %499 = vmatprep.subr.mxu0 0.0
    %500 = vmatpush1.xpose.msra.mxu0 0.0
    %501 = vmatprep.subr.mxu0 0.0
    %502 = vmatpush1.xpose.msra.mxu0 0.0
    %503 = vmatprep.subr.mxu0 0.0
    %504 = vmatpush1.xpose.msra.mxu0 0.0
    %505 = vmatprep.subr.mxu0 0.0
    %506 = vmatpush1.xpose.msra.mxu0 0.0
    %507 = vmatprep.subr.mxu0 0.0
    %508 = vmatpush1.xpose.msra.mxu0 0.0
    %509 = vmatprep.subr.mxu0 0.0
    %510 = vmatpush1.xpose.msra.mxu0 0.0
    %511 = vmatprep.subr.mxu0 0.0
    %512 = vmatpush1.xpose.msra.mxu0 0.0
    %513 = vmatprep.mubr.f32.mxu0 0.0
    %514 = vmatmul.mubr.f32.gmra.mrb[0].mxu0 %v445
    %v515 = vpop.f32.mrb[0].mxu0
    %v516 = vadd.f32 0.0, %v515
    %v517 = vpop.f32.mrb[0].mxu0
    %518 = vdwg.mxu0
    %v519 = vsel %vm190, %v516, -inf
    %520 = vmax.xlane.f32.xlu0 %v519
    %v521 = vpop.xlane.xlu0 %520
    %v522 = vsub.f32 %v516, %v521
    %v523 = vmul.f32 %v522, 1.442695
    %v524 = vpow.pop %v523
    %v525 = vsel %vm190, %v524, 0.0
    %526 = vadd.xlane.f32.xlu0 %v525
    %v527 = vpop.xlane.xlu0 %526
    %v528 = vrcp.pop %v527
    %v529 = vmul.f32 %v524, %v528
    %530 = vrot.lane.b32.xlu0 %v104, 96
    %v531 = vpop.permute.xlu0 %530
    %v534 = vsel %vm190, %v529, 0
    %536 = vmatprep.subr.mxu0 0.0
    %537 = vmatpush1.msra.mxu0 %v531
    %538 = vmatprep.subr.mxu0 0.0
    %539 = vmatpush1.msra.mxu0 0.0
    %540 = vmatprep.subr.mxu0 0.0
    %541 = vmatpush1.msra.mxu0 0.0
    %542 = vmatprep.subr.mxu0 0.0
    %543 = vmatpush1.msra.mxu0 0.0
    %544 = vmatprep.subr.mxu0 0.0
    %545 = vmatpush1.msra.mxu0 0.0
    %546 = vmatprep.subr.mxu0 0.0
    %547 = vmatpush1.msra.mxu0 0.0
    %548 = vmatprep.subr.mxu0 0.0
    %549 = vmatpush1.msra.mxu0 0.0
    %550 = vmatprep.subr.mxu0 0.0
    %551 = vmatpush1.msra.mxu0 0.0
    %552 = vmatprep.subr.mxu0 0.0
    %553 = vmatpush1.msra.mxu0 0.0
    %554 = vmatprep.subr.mxu0 0.0
    %555 = vmatpush1.msra.mxu0 0.0
    %556 = vmatprep.subr.mxu0 0.0
    %557 = vmatpush1.msra.mxu0 0.0
    %558 = vmatprep.subr.mxu0 0.0
    %559 = vmatpush1.msra.mxu0 0.0
    %560 = vmatprep.subr.mxu0 0.0
    %561 = vmatpush1.msra.mxu0 0.0
    %562 = vmatprep.subr.mxu0 0.0
    %563 = vmatpush1.msra.mxu0 0.0
    %564 = vmatprep.subr.mxu0 0.0
    %565 = vmatpush1.msra.mxu0 0.0
    %566 = vmatprep.subr.mxu0 0.0
    %567 = vmatpush1.msra.mxu0 0.0
    %568 = vmatprep.subr.mxu0 0.0
    %569 = vmatpush1.msra.mxu0 0.0
    %570 = vmatprep.subr.mxu0 0.0
    %571 = vmatpush1.msra.mxu0 0.0
    %572 = vmatprep.subr.mxu0 0.0
    %573 = vmatpush1.msra.mxu0 0.0
    %574 = vmatprep.subr.mxu0 0.0
    %575 = vmatpush1.msra.mxu0 0.0
    %576 = vmatprep.subr.mxu0 0.0
    %577 = vmatpush1.msra.mxu0 0.0
    %578 = vmatprep.subr.mxu0 0.0
    %579 = vmatpush1.msra.mxu0 0.0
    %580 = vmatprep.subr.mxu0 0.0
    %581 = vmatpush1.msra.mxu0 0.0
    %582 = vmatprep.subr.mxu0 0.0
    %583 = vmatpush1.msra.mxu0 0.0
    %584 = vmatprep.subr.mxu0 0.0
    %585 = vmatpush1.msra.mxu0 0.0
    %586 = vmatprep.subr.mxu0 0.0
    %587 = vmatpush1.msra.mxu0 0.0
    %588 = vmatprep.subr.mxu0 0.0
    %589 = vmatpush1.msra.mxu0 0.0
    %590 = vmatprep.subr.mxu0 0.0
    %591 = vmatpush1.msra.mxu0 0.0
    %592 = vmatprep.subr.mxu0 0.0
    %593 = vmatpush1.msra.mxu0 0.0
    %594 = vmatprep.subr.mxu0 0.0
    %595 = vmatpush1.msra.mxu0 0.0
    %596 = vmatprep.subr.mxu0 0.0
    %597 = vmatpush1.msra.mxu0 0.0
    %598 = vmatprep.subr.mxu0 0.0
    %599 = vmatpush1.msra.mxu0 0.0
    %600 = vmatprep.mubr.f32.mxu0 0.0
    %601 = vmatmul.mubr.f32.gmra.mrb[0].mxu0 %v534
    %v602 = vpop.f32.mrb[0].mxu0
    %v603 = vadd.f32 0.0, %v602
    %v604 = vpop.f32.mrb[0].mxu0
    %605 = vdwg.mxu0
    %606 = vrot.lane.b32.xlu0 %v102, 80
    %v607 = vpop.permute.xlu0 %606
    %608 = vrot.lane.b32.xlu0 %v102, 16
    %v609 = vpop.permute.xlu0 %608
    %v610 = vsel %vm115, %v607, 0
    %v612 = vsel %vm115, %v609, 0
    %614 = vmatprep.subr.mxu0 0.0
    %615 = vmatpush1.xpose.msra.mxu0 %v612
    %616 = vmatprep.subr.mxu0 0.0
    %617 = vmatpush1.xpose.msra.mxu0 0.0
    %618 = vmatprep.subr.mxu0 0.0
    %619 = vmatpush1.xpose.msra.mxu0 0.0
    %620 = vmatprep.subr.mxu0 0.0
    %621 = vmatpush1.xpose.msra.mxu0 0.0
    %622 = vmatprep.subr.mxu0 0.0
    %623 = vmatpush1.xpose.msra.mxu0 0.0
    %624 = vmatprep.subr.mxu0 0.0
    %625 = vmatpush1.xpose.msra.mxu0 0.0
    %626 = vmatprep.subr.mxu0 0.0
    %627 = vmatpush1.xpose.msra.mxu0 0.0
    %628 = vmatprep.subr.mxu0 0.0
    %629 = vmatpush1.xpose.msra.mxu0 0.0
    %630 = vmatprep.subr.mxu0 0.0
    %631 = vmatpush1.xpose.msra.mxu0 0.0
    %632 = vmatprep.subr.mxu0 0.0
    %633 = vmatpush1.xpose.msra.mxu0 0.0
    %634 = vmatprep.subr.mxu0 0.0
    %635 = vmatpush1.xpose.msra.mxu0 0.0
    %636 = vmatprep.subr.mxu0 0.0
    %637 = vmatpush1.xpose.msra.mxu0 0.0
    %638 = vmatprep.subr.mxu0 0.0
    %639 = vmatpush1.xpose.msra.mxu0 0.0
    %640 = vmatprep.subr.mxu0 0.0
    %641 = vmatpush1.xpose.msra.mxu0 0.0
    %642 = vmatprep.subr.mxu0 0.0
    %643 = vmatpush1.xpose.msra.mxu0 0.0
    %644 = vmatprep.subr.mxu0 0.0
    %645 = vmatpush1.xpose.msra.mxu0 0.0
    %646 = vmatprep.subr.mxu0 0.0
    %647 = vmatpush1.xpose.msra.mxu0 0.0
    %648 = vmatprep.subr.mxu0 0.0
    %649 = vmatpush1.xpose.msra.mxu0 0.0
    %650 = vmatprep.subr.mxu0 0.0
    %651 = vmatpush1.xpose.msra.mxu0 0.0
    %652 = vmatprep.subr.mxu0 0.0
    %653 = vmatpush1.xpose.msra.mxu0 0.0
    %654 = vmatprep.subr.mxu0 0.0
    %655 = vmatpush1.xpose.msra.mxu0 0.0
    %656 = vmatprep.subr.mxu0 0.0
    %657 = vmatpush1.xpose.msra.mxu0 0.0
    %658 = vmatprep.subr.mxu0 0.0
    %659 = vmatpush1.xpose.msra.mxu0 0.0
    %660 = vmatprep.subr.mxu0 0.0
    %661 = vmatpush1.xpose.msra.mxu0 0.0
    %662 = vmatprep.subr.mxu0 0.0
    %663 = vmatpush1.xpose.msra.mxu0 0.0
    %664 = vmatprep.subr.mxu0 0.0
    %665 = vmatpush1.xpose.msra.mxu0 0.0
    %666 = vmatprep.subr.mxu0 0.0
    %667 = vmatpush1.xpose.msra.mxu0 0.0
    %668 = vmatprep.subr.mxu0 0.0
    %669 = vmatpush1.xpose.msra.mxu0 0.0
    %670 = vmatprep.subr.mxu0 0.0
    %671 = vmatpush1.xpose.msra.mxu0 0.0
    %672 = vmatprep.subr.mxu0 0.0
    %673 = vmatpush1.xpose.msra.mxu0 0.0
    %674 = vmatprep.subr.mxu0 0.0
    %675 = vmatpush1.xpose.msra.mxu0 0.0
    %676 = vmatprep.subr.mxu0 0.0
    %677 = vmatpush1.xpose.msra.mxu0 0.0
    %678 = vmatprep.mubr.f32.mxu0 0.0
    %679 = vmatmul.mubr.f32.gmra.mrb[0].mxu0 %v610
    %v680 = vpop.f32.mrb[0].mxu0
    %v681 = vadd.f32 0.0, %v680
    %v682 = vpop.f32.mrb[0].mxu0
    %683 = vdwg.mxu0
    %v684 = vsel %vm190, %v681, -inf
    %685 = vmax.xlane.f32.xlu0 %v684
    %v686 = vpop.xlane.xlu0 %685
    %v687 = vsub.f32 %v681, %v686
    %v688 = vmul.f32 %v687, 1.442695
    %v689 = vpow.pop %v688
    %v690 = vsel %vm190, %v689, 0.0
    %691 = vadd.xlane.f32.xlu0 %v690
    %v692 = vpop.xlane.xlu0 %691
    %v693 = vrcp.pop %v692
    %v694 = vmul.f32 %v689, %v693
    %695 = vrot.lane.b32.xlu0 %v104, 80
    %v696 = vpop.permute.xlu0 %695
    %v699 = vsel %vm190, %v694, 0
    %701 = vmatprep.subr.mxu0 0.0
    %702 = vmatpush1.msra.mxu0 %v696
    %703 = vmatprep.subr.mxu0 0.0
    %704 = vmatpush1.msra.mxu0 0.0
    %705 = vmatprep.subr.mxu0 0.0
    %706 = vmatpush1.msra.mxu0 0.0
    %707 = vmatprep.subr.mxu0 0.0
    %708 = vmatpush1.msra.mxu0 0.0
    %709 = vmatprep.subr.mxu0 0.0
    %710 = vmatpush1.msra.mxu0 0.0
    %711 = vmatprep.subr.mxu0 0.0
    %712 = vmatpush1.msra.mxu0 0.0
    %713 = vmatprep.subr.mxu0 0.0
    %714 = vmatpush1.msra.mxu0 0.0
    %715 = vmatprep.subr.mxu0 0.0
    %716 = vmatpush1.msra.mxu0 0.0
    %717 = vmatprep.subr.mxu0 0.0
    %718 = vmatpush1.msra.mxu0 0.0
    %719 = vmatprep.subr.mxu0 0.0
    %720 = vmatpush1.msra.mxu0 0.0
    %721 = vmatprep.subr.mxu0 0.0
    %722 = vmatpush1.msra.mxu0 0.0
    %723 = vmatprep.subr.mxu0 0.0
    %724 = vmatpush1.msra.mxu0 0.0
    %725 = vmatprep.subr.mxu0 0.0
    %726 = vmatpush1.msra.mxu0 0.0
    %727 = vmatprep.subr.mxu0 0.0
    %728 = vmatpush1.msra.mxu0 0.0
    %729 = vmatprep.subr.mxu0 0.0
    %730 = vmatpush1.msra.mxu0 0.0
    %731 = vmatprep.subr.mxu0 0.0
    %732 = vmatpush1.msra.mxu0 0.0
    %733 = vmatprep.subr.mxu0 0.0
    %734 = vmatpush1.msra.mxu0 0.0
    %735 = vmatprep.subr.mxu0 0.0
    %736 = vmatpush1.msra.mxu0 0.0
    %737 = vmatprep.subr.mxu0 0.0
    %738 = vmatpush1.msra.mxu0 0.0
    %739 = vmatprep.subr.mxu0 0.0
    %740 = vmatpush1.msra.mxu0 0.0
    %741 = vmatprep.subr.mxu0 0.0
    %742 = vmatpush1.msra.mxu0 0.0
    %743 = vmatprep.subr.mxu0 0.0
    %744 = vmatpush1.msra.mxu0 0.0
    %745 = vmatprep.subr.mxu0 0.0
    %746 = vmatpush1.msra.mxu0 0.0
    %747 = vmatprep.subr.mxu0 0.0
    %748 = vmatpush1.msra.mxu0 0.0
    %749 = vmatprep.subr.mxu0 0.0
    %750 = vmatpush1.msra.mxu0 0.0
    %751 = vmatprep.subr.mxu0 0.0
    %752 = vmatpush1.msra.mxu0 0.0
    %753 = vmatprep.subr.mxu0 0.0
    %754 = vmatpush1.msra.mxu0 0.0
    %755 = vmatprep.subr.mxu0 0.0
    %756 = vmatpush1.msra.mxu0 0.0
    %757 = vmatprep.subr.mxu0 0.0
    %758 = vmatpush1.msra.mxu0 0.0
    %759 = vmatprep.subr.mxu0 0.0
    %760 = vmatpush1.msra.mxu0 0.0
    %761 = vmatprep.subr.mxu0 0.0
    %762 = vmatpush1.msra.mxu0 0.0
    %763 = vmatprep.subr.mxu0 0.0
    %764 = vmatpush1.msra.mxu0 0.0
    %765 = vmatprep.mubr.f32.mxu0 0.0
    %766 = vmatmul.mubr.f32.gmra.mrb[0].mxu0 %v699
    %v767 = vpop.f32.mrb[0].mxu0
    %v768 = vadd.f32 0.0, %v767
    %v769 = vpop.f32.mrb[0].mxu0
    %770 = vdwg.mxu0
    %772 = vrot.lane.b32.xlu0 %v438, 16
    %v773 = vpop.permute.xlu0 %772
    %776 = vrot.lane.b32.xlu0 %v603, 32
    %v777 = vpop.permute.xlu0 %776
    %780 = vrot.lane.b32.xlu0 %v768, 48
    %v781 = vpop.permute.xlu0 %780
    %v783 = vsel %vm115, %v272, %v773
    %v784 = vsel %vm28, %v783, %v777
    %vm785 = vcmask 392192
    %v786 = vsel %vm785, %v784, %v781
    %788 = vrot.lane.b32.xlu0 %v108, 64
    %v789 = vpop.permute.xlu0 %788
    %v790 = vsel %vm115, %v108, 0
    %v792 = vsel %vm115, %v789, 0
    %794 = vmatprep.subr.mxu0 0.0
    %795 = vmatpush1.xpose.msra.mxu0 %v792
    %796 = vmatprep.subr.mxu0 0.0
    %797 = vmatpush1.xpose.msra.mxu0 0.0
    %798 = vmatprep.subr.mxu0 0.0
    %799 = vmatpush1.xpose.msra.mxu0 0.0
    %800 = vmatprep.subr.mxu0 0.0
    %801 = vmatpush1.xpose.msra.mxu0 0.0
    %802 = vmatprep.subr.mxu0 0.0
    %803 = vmatpush1.xpose.msra.mxu0 0.0
    %804 = vmatprep.subr.mxu0 0.0
    %805 = vmatpush1.xpose.msra.mxu0 0.0
    %806 = vmatprep.subr.mxu0 0.0
    %807 = vmatpush1.xpose.msra.mxu0 0.0
    %808 = vmatprep.subr.mxu0 0.0
    %809 = vmatpush1.xpose.msra.mxu0 0.0
    %810 = vmatprep.subr.mxu0 0.0
    %811 = vmatpush1.xpose.msra.mxu0 0.0
    %812 = vmatprep.subr.mxu0 0.0
    %813 = vmatpush1.xpose.msra.mxu0 0.0
    %814 = vmatprep.subr.mxu0 0.0
    %815 = vmatpush1.xpose.msra.mxu0 0.0
    %816 = vmatprep.subr.mxu0 0.0
    %817 = vmatpush1.xpose.msra.mxu0 0.0
    %818 = vmatprep.subr.mxu0 0.0
    %819 = vmatpush1.xpose.msra.mxu0 0.0
    %820 = vmatprep.subr.mxu0 0.0
    %821 = vmatpush1.xpose.msra.mxu0 0.0
    %822 = vmatprep.subr.mxu0 0.0
    %823 = vmatpush1.xpose.msra.mxu0 0.0
    %824 = vmatprep.subr.mxu0 0.0
    %825 = vmatpush1.xpose.msra.mxu0 0.0
    %826 = vmatprep.subr.mxu0 0.0
    %827 = vmatpush1.xpose.msra.mxu0 0.0
    %828 = vmatprep.subr.mxu0 0.0
    %829 = vmatpush1.xpose.msra.mxu0 0.0
    %830 = vmatprep.subr.mxu0 0.0
    %831 = vmatpush1.xpose.msra.mxu0 0.0
    %832 = vmatprep.subr.mxu0 0.0
    %833 = vmatpush1.xpose.msra.mxu0 0.0
    %834 = vmatprep.subr.mxu0 0.0
    %835 = vmatpush1.xpose.msra.mxu0 0.0
    %836 = vmatprep.subr.mxu0 0.0
    %837 = vmatpush1.xpose.msra.mxu0 0.0
    %838 = vmatprep.subr.mxu0 0.0
    %839 = vmatpush1.xpose.msra.mxu0 0.0
    %840 = vmatprep.subr.mxu0 0.0
    %841 = vmatpush1.xpose.msra.mxu0 0.0
    %842 = vmatprep.subr.mxu0 0.0
    %843 = vmatpush1.xpose.msra.mxu0 0.0
    %844 = vmatprep.subr.mxu0 0.0
    %845 = vmatpush1.xpose.msra.mxu0 0.0
    %846 = vmatprep.subr.mxu0 0.0
    %847 = vmatpush1.xpose.msra.mxu0 0.0
    %848 = vmatprep.subr.mxu0 0.0
    %849 = vmatpush1.xpose.msra.mxu0 0.0
    %850 = vmatprep.subr.mxu0 0.0
    %851 = vmatpush1.xpose.msra.mxu0 0.0
    %852 = vmatprep.subr.mxu0 0.0
    %853 = vmatpush1.xpose.msra.mxu0 0.0
    %854 = vmatprep.subr.mxu0 0.0
    %855 = vmatpush1.xpose.msra.mxu0 0.0
    %856 = vmatprep.subr.mxu0 0.0
    %857 = vmatpush1.xpose.msra.mxu0 0.0
    %858 = vmatprep.mubr.f32.mxu0 0.0
    %859 = vmatmul.mubr.f32.gmra.mrb[0].mxu0 %v790
    %v860 = vpop.f32.mrb[0].mxu0
    %v861 = vadd.f32 0.0, %v860
    %v862 = vpop.f32.mrb[0].mxu0
    %863 = vdwg.mxu0
    %v864 = vsel %vm190, %v861, -inf
    %865 = vmax.xlane.f32.xlu0 %v864
    %v866 = vpop.xlane.xlu0 %865
    %v867 = vsub.f32 %v861, %v866
    %v868 = vmul.f32 %v867, 1.442695
    %v869 = vpow.pop %v868
    %v870 = vsel %vm190, %v869, 0.0
    %871 = vadd.xlane.f32.xlu0 %v870
    %v872 = vpop.xlane.xlu0 %871
    %v873 = vrcp.pop %v872
    %v874 = vmul.f32 %v869, %v873
    %v876 = vsel %vm190, %v874, 0
    %878 = vmatprep.subr.mxu0 0.0
    %879 = vmatpush1.msra.mxu0 %v110
    %880 = vmatprep.subr.mxu0 0.0
    %881 = vmatpush1.msra.mxu0 0.0
    %882 = vmatprep.subr.mxu0 0.0
    %883 = vmatpush1.msra.mxu0 0.0
    %884 = vmatprep.subr.mxu0 0.0
    %885 = vmatpush1.msra.mxu0 0.0
    %886 = vmatprep.subr.mxu0 0.0
    %887 = vmatpush1.msra.mxu0 0.0
    %888 = vmatprep.subr.mxu0 0.0
    %889 = vmatpush1.msra.mxu0 0.0
    %890 = vmatprep.subr.mxu0 0.0
    %891 = vmatpush1.msra.mxu0 0.0
    %892 = vmatprep.subr.mxu0 0.0
    %893 = vmatpush1.msra.mxu0 0.0
    %894 = vmatprep.subr.mxu0 0.0
    %895 = vmatpush1.msra.mxu0 0.0
    %896 = vmatprep.subr.mxu0 0.0
    %897 = vmatpush1.msra.mxu0 0.0
    %898 = vmatprep.subr.mxu0 0.0
    %899 = vmatpush1.msra.mxu0 0.0
    %900 = vmatprep.subr.mxu0 0.0
    %901 = vmatpush1.msra.mxu0 0.0
    %902 = vmatprep.subr.mxu0 0.0
    %903 = vmatpush1.msra.mxu0 0.0
    %904 = vmatprep.subr.mxu0 0.0
    %905 = vmatpush1.msra.mxu0 0.0
    %906 = vmatprep.subr.mxu0 0.0
    %907 = vmatpush1.msra.mxu0 0.0
    %908 = vmatprep.subr.mxu0 0.0
    %909 = vmatpush1.msra.mxu0 0.0
    %910 = vmatprep.subr.mxu0 0.0
    %911 = vmatpush1.msra.mxu0 0.0
    %912 = vmatprep.subr.mxu0 0.0
    %913 = vmatpush1.msra.mxu0 0.0
    %914 = vmatprep.subr.mxu0 0.0
    %915 = vmatpush1.msra.mxu0 0.0
    %916 = vmatprep.subr.mxu0 0.0
    %917 = vmatpush1.msra.mxu0 0.0
    %918 = vmatprep.subr.mxu0 0.0
    %919 = vmatpush1.msra.mxu0 0.0
    %920 = vmatprep.subr.mxu0 0.0
    %921 = vmatpush1.msra.mxu0 0.0
    %922 = vmatprep.subr.mxu0 0.0
    %923 = vmatpush1.msra.mxu0 0.0
    %924 = vmatprep.subr.mxu0 0.0
    %925 = vmatpush1.msra.mxu0 0.0
    %926 = vmatprep.subr.mxu0 0.0
    %927 = vmatpush1.msra.mxu0 0.0
    %928 = vmatprep.subr.mxu0 0.0
    %929 = vmatpush1.msra.mxu0 0.0
    %930 = vmatprep.subr.mxu0 0.0
    %931 = vmatpush1.msra.mxu0 0.0
    %932 = vmatprep.subr.mxu0 0.0
    %933 = vmatpush1.msra.mxu0 0.0
    %934 = vmatprep.subr.mxu0 0.0
    %935 = vmatpush1.msra.mxu0 0.0
    %936 = vmatprep.subr.mxu0 0.0
    %937 = vmatpush1.msra.mxu0 0.0
    %938 = vmatprep.subr.mxu0 0.0
    %939 = vmatpush1.msra.mxu0 0.0
    %940 = vmatprep.subr.mxu0 0.0
    %941 = vmatpush1.msra.mxu0 0.0
    %942 = vmatprep.mubr.f32.mxu0 0.0
    %943 = vmatmul.mubr.f32.gmra.mrb[0].mxu0 %v876
    %v944 = vpop.f32.mrb[0].mxu0
    %v945 = vadd.f32 0.0, %v944
    %v946 = vpop.f32.mrb[0].mxu0
    %947 = vdwg.mxu0
    %948 = vrot.lane.b32.xlu0 %v108, 112
    %v949 = vpop.permute.xlu0 %948
    %950 = vrot.lane.b32.xlu0 %v108, 48
    %v951 = vpop.permute.xlu0 %950
    %v952 = vsel %vm115, %v949, 0
    %v954 = vsel %vm115, %v951, 0
    %956 = vmatprep.subr.mxu0 0.0
    %957 = vmatpush1.xpose.msra.mxu0 %v954
    %958 = vmatprep.subr.mxu0 0.0
    %959 = vmatpush1.xpose.msra.mxu0 0.0
    %960 = vmatprep.subr.mxu0 0.0
    %961 = vmatpush1.xpose.msra.mxu0 0.0
    %962 = vmatprep.subr.mxu0 0.0
    %963 = vmatpush1.xpose.msra.mxu0 0.0
    %964 = vmatprep.subr.mxu0 0.0
    %965 = vmatpush1.xpose.msra.mxu0 0.0
    %966 = vmatprep.subr.mxu0 0.0
    %967 = vmatpush1.xpose.msra.mxu0 0.0
    %968 = vmatprep.subr.mxu0 0.0
    %969 = vmatpush1.xpose.msra.mxu0 0.0
    %970 = vmatprep.subr.mxu0 0.0
    %971 = vmatpush1.xpose.msra.mxu0 0.0
    %972 = vmatprep.subr.mxu0 0.0
    %973 = vmatpush1.xpose.msra.mxu0 0.0
    %974 = vmatprep.subr.mxu0 0.0
    %975 = vmatpush1.xpose.msra.mxu0 0.0
    %976 = vmatprep.subr.mxu0 0.0
    %977 = vmatpush1.xpose.msra.mxu0 0.0
    %978 = vmatprep.subr.mxu0 0.0
    %979 = vmatpush1.xpose.msra.mxu0 0.0
    %980 = vmatprep.subr.mxu0 0.0
    %981 = vmatpush1.xpose.msra.mxu0 0.0
    %982 = vmatprep.subr.mxu0 0.0
    %983 = vmatpush1.xpose.msra.mxu0 0.0
    %984 = vmatprep.subr.mxu0 0.0
    %985 = vmatpush1.xpose.msra.mxu0 0.0
    %986 = vmatprep.subr.mxu0 0.0
    %987 = vmatpush1.xpose.msra.mxu0 0.0
    %988 = vmatprep.subr.mxu0 0.0
    %989 = vmatpush1.xpose.msra.mxu0 0.0
    %990 = vmatprep.subr.mxu0 0.0
    %991 = vmatpush1.xpose.msra.mxu0 0.0
    %992 = vmatprep.subr.mxu0 0.0
    %993 = vmatpush1.xpose.msra.mxu0 0.0
    %994 = vmatprep.subr.mxu0 0.0
    %995 = vmatpush1.xpose.msra.mxu0 0.0
    %996 = vmatprep.subr.mxu0 0.0
    %997 = vmatpush1.xpose.msra.mxu0 0.0
    %998 = vmatprep.subr.mxu0 0.0
    %999 = vmatpush1.xpose.msra.mxu0 0.0
    %1000 = vmatprep.subr.mxu0 0.0
    %1001 = vmatpush1.xpose.msra.mxu0 0.0
    %1002 = vmatprep.subr.mxu0 0.0
    %1003 = vmatpush1.xpose.msra.mxu0 0.0
    %1004 = vmatprep.subr.mxu0 0.0
    %1005 = vmatpush1.xpose.msra.mxu0 0.0
    %1006 = vmatprep.subr.mxu0 0.0
    %1007 = vmatpush1.xpose.msra.mxu0 0.0
    %1008 = vmatprep.subr.mxu0 0.0
    %1009 = vmatpush1.xpose.msra.mxu0 0.0
    %1010 = vmatprep.subr.mxu0 0.0
    %1011 = vmatpush1.xpose.msra.mxu0 0.0
    %1012 = vmatprep.subr.mxu0 0.0
    %1013 = vmatpush1.xpose.msra.mxu0 0.0
    %1014 = vmatprep.subr.mxu0 0.0
    %1015 = vmatpush1.xpose.msra.mxu0 0.0
    %1016 = vmatprep.subr.mxu0 0.0
    %1017 = vmatpush1.xpose.msra.mxu0 0.0
    %1018 = vmatprep.subr.mxu0 0.0
    %1019 = vmatpush1.xpose.msra.mxu0 0.0
    %1020 = vmatprep.mubr.f32.mxu0 0.0
    %1021 = vmatmul.mubr.f32.gmra.mrb[0].mxu0 %v952
    %v1022 = vpop.f32.mrb[0].mxu0
    %v1023 = vadd.f32 0.0, %v1022
    %v1024 = vpop.f32.mrb[0].mxu0
    %1025 = vdwg.mxu0
    %v1026 = vsel %vm190, %v1023, -inf
    %1027 = vmax.xlane.f32.xlu0 %v1026
    %v1028 = vpop.xlane.xlu0 %1027
    %v1029 = vsub.f32 %v1023, %v1028
    %v1030 = vmul.f32 %v1029, 1.442695
    %v1031 = vpow.pop %v1030
    %v1032 = vsel %vm190, %v1031, 0.0
    %1033 = vadd.xlane.f32.xlu0 %v1032
    %v1034 = vpop.xlane.xlu0 %1033
    %v1035 = vrcp.pop %v1034
    %v1036 = vmul.f32 %v1031, %v1035
    %1038 = vrot.lane.b32.xlu0 %v110, 112
    %v1039 = vpop.permute.xlu0 %1038
    %v1042 = vsel %vm190, %v1036, 0
    %1044 = vmatprep.subr.mxu0 0.0
    %1045 = vmatpush1.msra.mxu0 %v1039
    %1046 = vmatprep.subr.mxu0 0.0
    %1047 = vmatpush1.msra.mxu0 0.0
    %1048 = vmatprep.subr.mxu0 0.0
    %1049 = vmatpush1.msra.mxu0 0.0
    %1050 = vmatprep.subr.mxu0 0.0
    %1051 = vmatpush1.msra.mxu0 0.0
    %1052 = vmatprep.subr.mxu0 0.0
    %1053 = vmatpush1.msra.mxu0 0.0
    %1054 = vmatprep.subr.mxu0 0.0
    %1055 = vmatpush1.msra.mxu0 0.0
    %1056 = vmatprep.subr.mxu0 0.0
    %1057 = vmatpush1.msra.mxu0 0.0
    %1058 = vmatprep.subr.mxu0 0.0
    %1059 = vmatpush1.msra.mxu0 0.0
    %1060 = vmatprep.subr.mxu0 0.0
    %1061 = vmatpush1.msra.mxu0 0.0
    %1062 = vmatprep.subr.mxu0 0.0
    %1063 = vmatpush1.msra.mxu0 0.0
    %1064 = vmatprep.subr.mxu0 0.0
    %1065 = vmatpush1.msra.mxu0 0.0
    %1066 = vmatprep.subr.mxu0 0.0
    %1067 = vmatpush1.msra.mxu0 0.0
    %1068 = vmatprep.subr.mxu0 0.0
    %1069 = vmatpush1.msra.mxu0 0.0
    %1070 = vmatprep.subr.mxu0 0.0
    %1071 = vmatpush1.msra.mxu0 0.0
    %1072 = vmatprep.subr.mxu0 0.0
    %1073 = vmatpush1.msra.mxu0 0.0
    %1074 = vmatprep.subr.mxu0 0.0
    %1075 = vmatpush1.msra.mxu0 0.0
    %1076 = vmatprep.subr.mxu0 0.0
    %1077 = vmatpush1.msra.mxu0 0.0
    %1078 = vmatprep.subr.mxu0 0.0
    %1079 = vmatpush1.msra.mxu0 0.0
    %1080 = vmatprep.subr.mxu0 0.0
    %1081 = vmatpush1.msra.mxu0 0.0
    %1082 = vmatprep.subr.mxu0 0.0
    %1083 = vmatpush1.msra.mxu0 0.0
    %1084 = vmatprep.subr.mxu0 0.0
    %1085 = vmatpush1.msra.mxu0 0.0
    %1086 = vmatprep.subr.mxu0 0.0
    %1087 = vmatpush1.msra.mxu0 0.0
    %1088 = vmatprep.subr.mxu0 0.0
    %1089 = vmatpush1.msra.mxu0 0.0
    %1090 = vmatprep.subr.mxu0 0.0
    %1091 = vmatpush1.msra.mxu0 0.0
    %1092 = vmatprep.subr.mxu0 0.0
    %1093 = vmatpush1.msra.mxu0 0.0
    %1094 = vmatprep.subr.mxu0 0.0
    %1095 = vmatpush1.msra.mxu0 0.0
    %1096 = vmatprep.subr.mxu0 0.0
    %1097 = vmatpush1.msra.mxu0 0.0
    %1098 = vmatprep.subr.mxu0 0.0
    %1099 = vmatpush1.msra.mxu0 0.0
    %1100 = vmatprep.subr.mxu0 0.0
    %1101 = vmatpush1.msra.mxu0 0.0
    %1102 = vmatprep.subr.mxu0 0.0
    %1103 = vmatpush1.msra.mxu0 0.0
    %1104 = vmatprep.subr.mxu0 0.0
    %1105 = vmatpush1.msra.mxu0 0.0
    %1106 = vmatprep.subr.mxu0 0.0
    %1107 = vmatpush1.msra.mxu0 0.0
    %1108 = vmatprep.mubr.f32.mxu0 0.0
    %1109 = vmatmul.mubr.f32.gmra.mrb[0].mxu0 %v1042
    %v1110 = vpop.f32.mrb[0].mxu0
    %v1111 = vadd.f32 0.0, %v1110
    %v1112 = vpop.f32.mrb[0].mxu0
    %1113 = vdwg.mxu0
    %1114 = vrot.lane.b32.xlu0 %v108, 96
    %v1115 = vpop.permute.xlu0 %1114
    %1116 = vrot.lane.b32.xlu0 %v108, 32
    %v1117 = vpop.permute.xlu0 %1116
    %v1118 = vsel %vm115, %v1115, 0
    %v1120 = vsel %vm115, %v1117, 0
    %1122 = vmatprep.subr.mxu0 0.0
    %1123 = vmatpush1.xpose.msra.mxu0 %v1120
    %1124 = vmatprep.subr.mxu0 0.0
    %1125 = vmatpush1.xpose.msra.mxu0 0.0
    %1126 = vmatprep.subr.mxu0 0.0
    %1127 = vmatpush1.xpose.msra.mxu0 0.0
    %1128 = vmatprep.subr.mxu0 0.0
    %1129 = vmatpush1.xpose.msra.mxu0 0.0
    %1130 = vmatprep.subr.mxu0 0.0
    %1131 = vmatpush1.xpose.msra.mxu0 0.0
    %1132 = vmatprep.subr.mxu0 0.0
    %1133 = vmatpush1.xpose.msra.mxu0 0.0
    %1134 = vmatprep.subr.mxu0 0.0
    %1135 = vmatpush1.xpose.msra.mxu0 0.0
    %1136 = vmatprep.subr.mxu0 0.0
    %1137 = vmatpush1.xpose.msra.mxu0 0.0
    %1138 = vmatprep.subr.mxu0 0.0
    %1139 = vmatpush1.xpose.msra.mxu0 0.0
    %1140 = vmatprep.subr.mxu0 0.0
    %1141 = vmatpush1.xpose.msra.mxu0 0.0
    %1142 = vmatprep.subr.mxu0 0.0
    %1143 = vmatpush1.xpose.msra.mxu0 0.0
    %1144 = vmatprep.subr.mxu0 0.0
    %1145 = vmatpush1.xpose.msra.mxu0 0.0
    %1146 = vmatprep.subr.mxu0 0.0
    %1147 = vmatpush1.xpose.msra.mxu0 0.0
    %1148 = vmatprep.subr.mxu0 0.0
    %1149 = vmatpush1.xpose.msra.mxu0 0.0
    %1150 = vmatprep.subr.mxu0 0.0
    %1151 = vmatpush1.xpose.msra.mxu0 0.0
    %1152 = vmatprep.subr.mxu0 0.0
    %1153 = vmatpush1.xpose.msra.mxu0 0.0
    %1154 = vmatprep.subr.mxu0 0.0
    %1155 = vmatpush1.xpose.msra.mxu0 0.0
    %1156 = vmatprep.subr.mxu0 0.0
    %1157 = vmatpush1.xpose.msra.mxu0 0.0
    %1158 = vmatprep.subr.mxu0 0.0
    %1159 = vmatpush1.xpose.msra.mxu0 0.0
    %1160 = vmatprep.subr.mxu0 0.0
    %1161 = vmatpush1.xpose.msra.mxu0 0.0
    %1162 = vmatprep.subr.mxu0 0.0
    %1163 = vmatpush1.xpose.msra.mxu0 0.0
    %1164 = vmatprep.subr.mxu0 0.0
    %1165 = vmatpush1.xpose.msra.mxu0 0.0
    %1166 = vmatprep.subr.mxu0 0.0
    %1167 = vmatpush1.xpose.msra.mxu0 0.0
    %1168 = vmatprep.subr.mxu0 0.0
    %1169 = vmatpush1.xpose.msra.mxu0 0.0
    %1170 = vmatprep.subr.mxu0 0.0
    %1171 = vmatpush1.xpose.msra.mxu0 0.0
    %1172 = vmatprep.subr.mxu0 0.0
    %1173 = vmatpush1.xpose.msra.mxu0 0.0
    %1174 = vmatprep.subr.mxu0 0.0
    %1175 = vmatpush1.xpose.msra.mxu0 0.0
    %1176 = vmatprep.subr.mxu0 0.0
    %1177 = vmatpush1.xpose.msra.mxu0 0.0
    %1178 = vmatprep.subr.mxu0 0.0
    %1179 = vmatpush1.xpose.msra.mxu0 0.0
    %1180 = vmatprep.subr.mxu0 0.0
    %1181 = vmatpush1.xpose.msra.mxu0 0.0
    %1182 = vmatprep.subr.mxu0 0.0
    %1183 = vmatpush1.xpose.msra.mxu0 0.0
    %1184 = vmatprep.subr.mxu0 0.0
    %1185 = vmatpush1.xpose.msra.mxu0 0.0
    %1186 = vmatprep.mubr.f32.mxu0 0.0
    %1187 = vmatmul.mubr.f32.gmra.mrb[0].mxu0 %v1118
    %v1188 = vpop.f32.mrb[0].mxu0
    %v1189 = vadd.f32 0.0, %v1188
    %v1190 = vpop.f32.mrb[0].mxu0
    %1191 = vdwg.mxu0
    %v1192 = vsel %vm190, %v1189, -inf
    %1193 = vmax.xlane.f32.xlu0 %v1192
    %v1194 = vpop.xlane.xlu0 %1193
    %v1195 = vsub.f32 %v1189, %v1194
    %v1196 = vmul.f32 %v1195, 1.442695
    %v1197 = vpow.pop %v1196
    %v1198 = vsel %vm190, %v1197, 0.0
    %1199 = vadd.xlane.f32.xlu0 %v1198
    %v1200 = vpop.xlane.xlu0 %1199
    %v1201 = vrcp.pop %v1200
    %v1202 = vmul.f32 %v1197, %v1201
    %1203 = vrot.lane.b32.xlu0 %v110, 96
    %v1204 = vpop.permute.xlu0 %1203
    %v1207 = vsel %vm190, %v1202, 0
    %1209 = vmatprep.subr.mxu0 0.0
    %1210 = vmatpush1.msra.mxu0 %v1204
    %1211 = vmatprep.subr.mxu0 0.0
    %1212 = vmatpush1.msra.mxu0 0.0
    %1213 = vmatprep.subr.mxu0 0.0
    %1214 = vmatpush1.msra.mxu0 0.0
    %1215 = vmatprep.subr.mxu0 0.0
    %1216 = vmatpush1.msra.mxu0 0.0
    %1217 = vmatprep.subr.mxu0 0.0
    %1218 = vmatpush1.msra.mxu0 0.0
    %1219 = vmatprep.subr.mxu0 0.0
    %1220 = vmatpush1.msra.mxu0 0.0
    %1221 = vmatprep.subr.mxu0 0.0
    %1222 = vmatpush1.msra.mxu0 0.0
    %1223 = vmatprep.subr.mxu0 0.0
    %1224 = vmatpush1.msra.mxu0 0.0
    %1225 = vmatprep.subr.mxu0 0.0
    %1226 = vmatpush1.msra.mxu0 0.0
    %1227 = vmatprep.subr.mxu0 0.0
    %1228 = vmatpush1.msra.mxu0 0.0
    %1229 = vmatprep.subr.mxu0 0.0
    %1230 = vmatpush1.msra.mxu0 0.0
    %1231 = vmatprep.subr.mxu0 0.0
    %1232 = vmatpush1.msra.mxu0 0.0
    %1233 = vmatprep.subr.mxu0 0.0
    %1234 = vmatpush1.msra.mxu0 0.0
    %1235 = vmatprep.subr.mxu0 0.0
    %1236 = vmatpush1.msra.mxu0 0.0
    %1237 = vmatprep.subr.mxu0 0.0
    %1238 = vmatpush1.msra.mxu0 0.0
    %1239 = vmatprep.subr.mxu0 0.0
    %1240 = vmatpush1.msra.mxu0 0.0
    %1241 = vmatprep.subr.mxu0 0.0
    %1242 = vmatpush1.msra.mxu0 0.0
    %1243 = vmatprep.subr.mxu0 0.0
    %1244 = vmatpush1.msra.mxu0 0.0
    %1245 = vmatprep.subr.mxu0 0.0
    %1246 = vmatpush1.msra.mxu0 0.0
    %1247 = vmatprep.subr.mxu0 0.0
    %1248 = vmatpush1.msra.mxu0 0.0
    %1249 = vmatprep.subr.mxu0 0.0
    %1250 = vmatpush1.msra.mxu0 0.0
    %1251 = vmatprep.subr.mxu0 0.0
    %1252 = vmatpush1.msra.mxu0 0.0
    %1253 = vmatprep.subr.mxu0 0.0
    %1254 = vmatpush1.msra.mxu0 0.0
    %1255 = vmatprep.subr.mxu0 0.0
    %1256 = vmatpush1.msra.mxu0 0.0
    %1257 = vmatprep.subr.mxu0 0.0
    %1258 = vmatpush1.msra.mxu0 0.0
    %1259 = vmatprep.subr.mxu0 0.0
    %1260 = vmatpush1.msra.mxu0 0.0
    %1261 = vmatprep.subr.mxu0 0.0
    %1262 = vmatpush1.msra.mxu0 0.0
    %1263 = vmatprep.subr.mxu0 0.0
    %1264 = vmatpush1.msra.mxu0 0.0
    %1265 = vmatprep.subr.mxu0 0.0
    %1266 = vmatpush1.msra.mxu0 0.0
    %1267 = vmatprep.subr.mxu0 0.0
    %1268 = vmatpush1.msra.mxu0 0.0
    %1269 = vmatprep.subr.mxu0 0.0
    %1270 = vmatpush1.msra.mxu0 0.0
    %1271 = vmatprep.subr.mxu0 0.0
    %1272 = vmatpush1.msra.mxu0 0.0
    %1273 = vmatprep.mubr.f32.mxu0 0.0
    %1274 = vmatmul.mubr.f32.gmra.mrb[0].mxu0 %v1207
    %v1275 = vpop.f32.mrb[0].mxu0
    %v1276 = vadd.f32 0.0, %v1275
    %v1277 = vpop.f32.mrb[0].mxu0
    %1278 = vdwg.mxu0
    %1279 = vrot.lane.b32.xlu0 %v108, 80
    %v1280 = vpop.permute.xlu0 %1279
    %1281 = vrot.lane.b32.xlu0 %v108, 16
    %v1282 = vpop.permute.xlu0 %1281
    %v1283 = vsel %vm115, %v1280, 0
    %v1285 = vsel %vm115, %v1282, 0
    %1287 = vmatprep.subr.mxu0 0.0
    %1288 = vmatpush1.xpose.msra.mxu0 %v1285
    %1289 = vmatprep.subr.mxu0 0.0
    %1290 = vmatpush1.xpose.msra.mxu0 0.0
    %1291 = vmatprep.subr.mxu0 0.0
    %1292 = vmatpush1.xpose.msra.mxu0 0.0
    %1293 = vmatprep.subr.mxu0 0.0
    %1294 = vmatpush1.xpose.msra.mxu0 0.0
    %1295 = vmatprep.subr.mxu0 0.0
    %1296 = vmatpush1.xpose.msra.mxu0 0.0
    %1297 = vmatprep.subr.mxu0 0.0
    %1298 = vmatpush1.xpose.msra.mxu0 0.0
    %1299 = vmatprep.subr.mxu0 0.0
    %1300 = vmatpush1.xpose.msra.mxu0 0.0
    %1301 = vmatprep.subr.mxu0 0.0
    %1302 = vmatpush1.xpose.msra.mxu0 0.0
    %1303 = vmatprep.subr.mxu0 0.0
    %1304 = vmatpush1.xpose.msra.mxu0 0.0
    %1305 = vmatprep.subr.mxu0 0.0
    %1306 = vmatpush1.xpose.msra.mxu0 0.0
    %1307 = vmatprep.subr.mxu0 0.0
    %1308 = vmatpush1.xpose.msra.mxu0 0.0
    %1309 = vmatprep.subr.mxu0 0.0
    %1310 = vmatpush1.xpose.msra.mxu0 0.0
    %1311 = vmatprep.subr.mxu0 0.0
    %1312 = vmatpush1.xpose.msra.mxu0 0.0
    %1313 = vmatprep.subr.mxu0 0.0
    %1314 = vmatpush1.xpose.msra.mxu0 0.0
    %1315 = vmatprep.subr.mxu0 0.0
    %1316 = vmatpush1.xpose.msra.mxu0 0.0
    %1317 = vmatprep.subr.mxu0 0.0
    %1318 = vmatpush1.xpose.msra.mxu0 0.0
    %1319 = vmatprep.subr.mxu0 0.0
    %1320 = vmatpush1.xpose.msra.mxu0 0.0
    %1321 = vmatprep.subr.mxu0 0.0
    %1322 = vmatpush1.xpose.msra.mxu0 0.0
    %1323 = vmatprep.subr.mxu0 0.0
    %1324 = vmatpush1.xpose.msra.mxu0 0.0
    %1325 = vmatprep.subr.mxu0 0.0
    %1326 = vmatpush1.xpose.msra.mxu0 0.0
    %1327 = vmatprep.subr.mxu0 0.0
    %1328 = vmatpush1.xpose.msra.mxu0 0.0
    %1329 = vmatprep.subr.mxu0 0.0
    %1330 = vmatpush1.xpose.msra.mxu0 0.0
    %1331 = vmatprep.subr.mxu0 0.0
    %1332 = vmatpush1.xpose.msra.mxu0 0.0
    %1333 = vmatprep.subr.mxu0 0.0
    %1334 = vmatpush1.xpose.msra.mxu0 0.0
    %1335 = vmatprep.subr.mxu0 0.0
    %1336 = vmatpush1.xpose.msra.mxu0 0.0
    %1337 = vmatprep.subr.mxu0 0.0
    %1338 = vmatpush1.xpose.msra.mxu0 0.0
    %1339 = vmatprep.subr.mxu0 0.0
    %1340 = vmatpush1.xpose.msra.mxu0 0.0
    %1341 = vmatprep.subr.mxu0 0.0
    %1342 = vmatpush1.xpose.msra.mxu0 0.0
    %1343 = vmatprep.subr.mxu0 0.0
    %1344 = vmatpush1.xpose.msra.mxu0 0.0
    %1345 = vmatprep.subr.mxu0 0.0
    %1346 = vmatpush1.xpose.msra.mxu0 0.0
    %1347 = vmatprep.subr.mxu0 0.0
    %1348 = vmatpush1.xpose.msra.mxu0 0.0
    %1349 = vmatprep.subr.mxu0 0.0
    %1350 = vmatpush1.xpose.msra.mxu0 0.0
    %1351 = vmatprep.mubr.f32.mxu0 0.0
    %1352 = vmatmul.mubr.f32.gmra.mrb[0].mxu0 %v1283
    %v1353 = vpop.f32.mrb[0].mxu0
    %v1354 = vadd.f32 0.0, %v1353
    %v1355 = vpop.f32.mrb[0].mxu0
    %1356 = vdwg.mxu0
    %v1357 = vsel %vm190, %v1354, -inf
    %1358 = vmax.xlane.f32.xlu0 %v1357
    %v1359 = vpop.xlane.xlu0 %1358
    %v1360 = vsub.f32 %v1354, %v1359
    %v1361 = vmul.f32 %v1360, 1.442695
    %v1362 = vpow.pop %v1361
    %v1363 = vsel %vm190, %v1362, 0.0
    %1364 = vadd.xlane.f32.xlu0 %v1363
    %v1365 = vpop.xlane.xlu0 %1364
    %v1366 = vrcp.pop %v1365
    %v1367 = vmul.f32 %v1362, %v1366
    %1368 = vrot.lane.b32.xlu0 %v110, 80
    %v1369 = vpop.permute.xlu0 %1368
    %v1372 = vsel %vm190, %v1367, 0
    %1374 = vmatprep.subr.mxu0 0.0
    %1375 = vmatpush1.msra.mxu0 %v1369
    %1376 = vmatprep.subr.mxu0 0.0
    %1377 = vmatpush1.msra.mxu0 0.0
    %1378 = vmatprep.subr.mxu0 0.0
    %1379 = vmatpush1.msra.mxu0 0.0
    %1380 = vmatprep.subr.mxu0 0.0
    %1381 = vmatpush1.msra.mxu0 0.0
    %1382 = vmatprep.subr.mxu0 0.0
    %1383 = vmatpush1.msra.mxu0 0.0
    %1384 = vmatprep.subr.mxu0 0.0
    %1385 = vmatpush1.msra.mxu0 0.0
    %1386 = vmatprep.subr.mxu0 0.0
    %1387 = vmatpush1.msra.mxu0 0.0
    %1388 = vmatprep.subr.mxu0 0.0
    %1389 = vmatpush1.msra.mxu0 0.0
    %1390 = vmatprep.subr.mxu0 0.0
    %1391 = vmatpush1.msra.mxu0 0.0
    %1392 = vmatprep.subr.mxu0 0.0
    %1393 = vmatpush1.msra.mxu0 0.0
    %1394 = vmatprep.subr.mxu0 0.0
    %1395 = vmatpush1.msra.mxu0 0.0
    %1396 = vmatprep.subr.mxu0 0.0
    %1397 = vmatpush1.msra.mxu0 0.0
    %1398 = vmatprep.subr.mxu0 0.0
    %1399 = vmatpush1.msra.mxu0 0.0
    %1400 = vmatprep.subr.mxu0 0.0
    %1401 = vmatpush1.msra.mxu0 0.0
    %1402 = vmatprep.subr.mxu0 0.0
    %1403 = vmatpush1.msra.mxu0 0.0
    %1404 = vmatprep.subr.mxu0 0.0
    %1405 = vmatpush1.msra.mxu0 0.0
    %1406 = vmatprep.subr.mxu0 0.0
    %1407 = vmatpush1.msra.mxu0 0.0
    %1408 = vmatprep.subr.mxu0 0.0
    %1409 = vmatpush1.msra.mxu0 0.0
    %1410 = vmatprep.subr.mxu0 0.0
    %1411 = vmatpush1.msra.mxu0 0.0
    %1412 = vmatprep.subr.mxu0 0.0
    %1413 = vmatpush1.msra.mxu0 0.0
    %1414 = vmatprep.subr.mxu0 0.0
    %1415 = vmatpush1.msra.mxu0 0.0
    %1416 = vmatprep.subr.mxu0 0.0
    %1417 = vmatpush1.msra.mxu0 0.0
    %1418 = vmatprep.subr.mxu0 0.0
    %1419 = vmatpush1.msra.mxu0 0.0
    %1420 = vmatprep.subr.mxu0 0.0
    %1421 = vmatpush1.msra.mxu0 0.0
    %1422 = vmatprep.subr.mxu0 0.0
    %1423 = vmatpush1.msra.mxu0 0.0
    %1424 = vmatprep.subr.mxu0 0.0
    %1425 = vmatpush1.msra.mxu0 0.0
    %1426 = vmatprep.subr.mxu0 0.0
    %1427 = vmatpush1.msra.mxu0 0.0
    %1428 = vmatprep.subr.mxu0 0.0
    %1429 = vmatpush1.msra.mxu0 0.0
    %1430 = vmatprep.subr.mxu0 0.0
    %1431 = vmatpush1.msra.mxu0 0.0
    %1432 = vmatprep.subr.mxu0 0.0
    %1433 = vmatpush1.msra.mxu0 0.0
    %1434 = vmatprep.subr.mxu0 0.0
    %1435 = vmatpush1.msra.mxu0 0.0
    %1436 = vmatprep.subr.mxu0 0.0
    %1437 = vmatpush1.msra.mxu0 0.0
    %1438 = vmatprep.mubr.f32.mxu0 0.0
    %1439 = vmatmul.mubr.f32.gmra.mrb[0].mxu0 %v1372
    %v1440 = vpop.f32.mrb[0].mxu0
    %v1441 = vadd.f32 0.0, %v1440
    %v1442 = vpop.f32.mrb[0].mxu0
    %1443 = vdwg.mxu0
    %1445 = vrot.lane.b32.xlu0 %v1111, 16
    %v1446 = vpop.permute.xlu0 %1445
    %1449 = vrot.lane.b32.xlu0 %v1276, 32
    %v1450 = vpop.permute.xlu0 %1449
    %1453 = vrot.lane.b32.xlu0 %v1441, 48
    %v1454 = vpop.permute.xlu0 %1453
    %v1456 = vsel %vm115, %v945, %v1446
    %v1457 = vsel %vm28, %v1456, %v1450
    %v1458 = vsel %vm785, %v1457, %v1454
    %v1459 = vld [vmem:[%s2] sm:$0xff]
    %v1460 = vld [vmem:[%s2 + $0x8] sm:$0xff]
    %v1461 = vld [vmem:[%s2 + $0x10] sm:$0xff]
    %v1462 = vld [vmem:[%s2 + $0x18] sm:$0xff]
    %v1463 = vld [vmem:[%s2 + $0x20] sm:$0xff]
    %v1464 = vld [vmem:[%s2 + $0x28] sm:$0xff]
    %v1465 = vld [vmem:[%s2 + $0x30] sm:$0xff]
    %v1466 = vld [vmem:[%s2 + $0x38] sm:$0xff]
    %v1467 = vld [vmem:[%s3] sm:$0x1]
    %v1469 = vlaneseq
    %v1470 = vshrl.u32 %v1469, 7
    %v1471 = vsub.s32 0, %v1470
    %v1472 = vrot.slane %v1467, %v1471
    %vm1474 = vcmask 523264
    %v1476 = vsel %vm1474, %v786, 0
    %v1479 = vsel %vm1474, %v1458, 0
    %1481 = vmatprep.subr.mxu0 0.0
    %1482 = vmatpush1.msra.mxu0 %v1459
    %1483 = vmatprep.subr.mxu0 0.0
    %1484 = vmatpush1.msra.mxu0 %v1460
    %1485 = vmatprep.subr.mxu0 0.0
    %1486 = vmatpush1.msra.mxu0 %v1461
    %1487 = vmatprep.subr.mxu0 0.0
    %1488 = vmatpush1.msra.mxu0 %v1462
    %1489 = vmatprep.subr.mxu0 0.0
    %1490 = vmatpush1.msra.mxu0 %v1463
    %1491 = vmatprep.subr.mxu0 0.0
    %1492 = vmatpush1.msra.mxu0 %v1464
    %1493 = vmatprep.subr.mxu0 0.0
    %1494 = vmatpush1.msra.mxu0 %v1465
    %1495 = vmatprep.subr.mxu0 0.0
    %1496 = vmatpush1.msra.mxu0 %v1466
    %1497 = vmatprep.subr.mxu0 0.0
    %1498 = vmatpush1.msra.mxu0 0.0
    %1499 = vmatprep.subr.mxu0 0.0
    %1500 = vmatpush1.msra.mxu0 0.0
    %1501 = vmatprep.subr.mxu0 0.0
    %1502 = vmatpush1.msra.mxu0 0.0
    %1503 = vmatprep.subr.mxu0 0.0
    %1504 = vmatpush1.msra.mxu0 0.0
    %1505 = vmatprep.subr.mxu0 0.0
    %1506 = vmatpush1.msra.mxu0 0.0
    %1507 = vmatprep.subr.mxu0 0.0
    %1508 = vmatpush1.msra.mxu0 0.0
    %1509 = vmatprep.subr.mxu0 0.0
    %1510 = vmatpush1.msra.mxu0 0.0
    %1511 = vmatprep.subr.mxu0 0.0
    %1512 = vmatpush1.msra.mxu0 0.0
    %1513 = vmatprep.subr.mxu0 0.0
    %1514 = vmatpush1.msra.mxu0 0.0
    %1515 = vmatprep.subr.mxu0 0.0
    %1516 = vmatpush1.msra.mxu0 0.0
    %1517 = vmatprep.subr.mxu0 0.0
    %1518 = vmatpush1.msra.mxu0 0.0
    %1519 = vmatprep.subr.mxu0 0.0
    %1520 = vmatpush1.msra.mxu0 0.0
    %1521 = vmatprep.subr.mxu0 0.0
    %1522 = vmatpush1.msra.mxu0 0.0
    %1523 = vmatprep.subr.mxu0 0.0
    %1524 = vmatpush1.msra.mxu0 0.0
    %1525 = vmatprep.subr.mxu0 0.0
    %1526 = vmatpush1.msra.mxu0 0.0
    %1527 = vmatprep.subr.mxu0 0.0
    %1528 = vmatpush1.msra.mxu0 0.0
    %1529 = vmatprep.subr.mxu0 0.0
    %1530 = vmatpush1.msra.mxu0 0.0
    %1531 = vmatprep.subr.mxu0 0.0
    %1532 = vmatpush1.msra.mxu0 0.0
    %1533 = vmatprep.subr.mxu0 0.0
    %1534 = vmatpush1.msra.mxu0 0.0
    %1535 = vmatprep.subr.mxu0 0.0
    %1536 = vmatpush1.msra.mxu0 0.0
    %1537 = vmatprep.subr.mxu0 0.0
    %1538 = vmatpush1.msra.mxu0 0.0
    %1539 = vmatprep.subr.mxu0 0.0
    %1540 = vmatpush1.msra.mxu0 0.0
    %1541 = vmatprep.subr.mxu0 0.0
    %1542 = vmatpush1.msra.mxu0 0.0
    %1543 = vmatprep.subr.mxu0 0.0
    %1544 = vmatpush1.msra.mxu0 0.0
    %1545 = vmatprep.mubr.f32.mxu0 0.0
    %1546 = vmatmul.mubr.f32.gmra.mrb[0].mxu0 %v1476
    %v1547 = vpop.f32.mrb[0].mxu0
    %v1548 = vadd.f32 %v1472, %v1547
    %v1549 = vpop.f32.mrb[0].mxu0
    %1550 = vmatprep.mubr.f32.mxu0 0.0
    %1551 = vmatmul.mubr.f32.gmra.mrb[0].mxu0 %v1479
    %v1552 = vpop.f32.mrb[0].mxu0
    %v1553 = vadd.f32 %v1472, %v1552
    %v1554 = vpop.f32.mrb[0].mxu0
    %1555 = vdwg.mxu0
    %1556 = vst.msk [vmem:[#allocation2] sm:$0xff] %vm28, %v1548
    %1557 = vst.msk [vmem:[#allocation2 + $0x8] sm:$0xff] %vm28, %v1553
    // Predicated region
    $region18: #{tpu_custom_call.1} parent=1 // pred_check
      _
    $region19: #{tpu_custom_call.1} parent=1 // pred_check_branch
      %1559 = sbr.rel (0) target = $region21
    $region20: #{tpu_custom_call.1} parent=1 // pred_region
      %s1561 = ssub.s32 256, 256
      %1562 = vsyncadd [#allocation3], %s1561
      %s1563 = sshll.u32 [#allocation2], 4
      %s1564 = int_to_ptr.vmem [resolvable:$true] %s1563
      %1569 = dma.vmem_to_hbm [thread:$0]  %s1564, 256, %s4, [#allocation3], 128, 128, 8
    $region21: #{tpu_custom_call.1} parent=1 // pred_fallthru
      _
    // Predicated region
    $region22: #{tpu_custom_call.1} parent=1 // pred_check
      _
    $region23: #{tpu_custom_call.1} parent=1 // pred_check_branch
      %1571 = sbr.rel (0) target = $region25
    $region24: #{tpu_custom_call.1} parent=1 // pred_region
      %1572 = dma.done [#allocation3], 256
    $region25: #{tpu_custom_call.1} parent=1 // pred_fallthru
      _
    %1573 = vsyncpa [#allocation3], 1

</llo_original>
